<compile_context>
chip_gen: v5e
topology: v5e:2x2
jax: 0.10.0
libtpu: 0.0.40
codegen_flags: <defaults>
</compile_context>

<pallas_src>
import numpy as np
import jax
import jax.numpy as jnp
from jax.experimental import pallas as pl
from jax.experimental.pallas import tpu as pltpu

# ----------------------------------------------------------------------------
# Problem sizes (small, consistent with the torch module; resolution > 2 so the
# mid kernels are 3x3).
B, C, H, W = 4, 32, 8, 8
Z = 16                       # z_channels (fixed in the torch module)
MID = C // 4                 # mid_channels
HW = H * W
BHW = B * HW
LANES = 128                  # pixels per kernel tile = one vreg lane width
FINAL_SCALE = 0.5

assert LANES % HW == 0 and BHW % LANES == 0
N_TILES = BHW // LANES       # grid size (2 -> one tile per v7x TensorCore)


def _pad(n, m):
    return ((n + m - 1) // m) * m


# ----------------------------------------------------------------------------
# Static slab layouts (row offsets are Python constants shared by the packer and
# the kernel; static ref slices are free in-kernel).

# bf16 weight slab: row offsets 16-aligned (bf16 tile is (16,128)).
_W_ENTRIES = [
    ("W1F", 2 * MID, 2 * C),        # fused phi/theta 1x1      (16, 64)
    ("W2F", 2 * MID, 18 * MID),     # fused 3x3 (im2col)       (16, 144)
    ("W3F", 2 * MID, 18 * MID),     # fused 3x3 (im2col)       (16, 144)
    ("W4F", 4 * Z + C, 2 * MID),    # fused final 1x1          (96, 16)
    ("ZW", C, Z),                   # z_projection             (32, 16)
    ("RW1", MID, C),                # res block 1x1            (8, 32)
    ("RW2", MID, 9 * MID),          # res block 3x3            (8, 72)
    ("RW3", MID, 9 * MID),          # res block 3x3            (8, 72)
    ("RW4", C, MID),                # res block 1x1            (32, 8)
]
W_OFF, _off = {}, 0
for _n, _r, _c in _W_ENTRIES:
    W_OFF[_n] = _off
    _off += _pad(_r, 16)
W_ROWS, W_COLS = _off, 18 * MID     # (256, 144)

# f32 slab: 3x3 border masks (pre-broadcast, rows 0..8) + all biases
# (pre-broadcast to 128 lanes so no in-kernel lane broadcast is needed).
_B_ENTRIES = [
    ("MASK", 16), ("B1F", 2 * MID), ("B2F", 2 * MID), ("B3F", 2 * MID),
    ("B4F", 4 * Z + C), ("ZB", C), ("RB1", MID), ("RB2", MID), ("RB3", MID),
    ("RB4", C),
]
B_OFF, _off = {}, 0
for _n, _r in _B_ENTRIES:
    B_OFF[_n] = _off
    _off += _pad(_r, 8)
B_ROWS = _off                       # 248


# ----------------------------------------------------------------------------
# Kernel helpers

def _gelu_bf16(v):
    # TODO(synk): torch nn.GELU defaults to the exact erf form; tanh approx used
    # (erf is not guaranteed to lower in Mosaic).  bf16 halves EUP/VPU work on
    # v6e/v7x; the downstream matmul operand is bf16 anyway.
    return jax.nn.gelu(v.astype(jnp.bfloat16), approximate=True)


def _gelu_f32(v):
    return jax.nn.gelu(v, approximate=True)


def _mm(w_ref, name, rows, cols, act_bf16, b_ref, bname):
    """(rows, cols) slab slice @ (cols, 128) bf16 activation, f32 accum, +bias."""
    w = w_ref[W_OFF[name]:W_OFF[name] + rows, 0:cols]
    out = jnp.dot(w, act_bf16, preferred_element_type=jnp.float32)
    return out + b_ref[B_OFF[bname]:B_OFF[bname] + rows, :]


def _conv3x3(g_f32, w_ref, name, rows, b_ref, bname):
    """3x3 conv (padding=1) as ONE im2col matmul.

    g_f32: (Cin, 128) post-GELU activation.  Tap (kh, kw) reads flat pixel
    i + (kh-1)*W + (kw-1) via a lane rotation; out-of-image / cross-image taps
    are zeroed by the precomputed border masks (the 128-lane tile holds whole
    images, so wrap-around lanes are always masked).  Taps are cast to bf16
    before the concat so the (9*Cin, 128) patch never exists in f32.
    """
    cin = g_f32.shape[0]
    taps = []
    for kh in range(3):
        for kw in range(3):
            delta = (kh - 1) * W + (kw - 1)
            if delta == 0:
                taps.append(g_f32.astype(jnp.bfloat16))
            else:
                midx = B_OFF["MASK"] + kh * 3 + kw
                mask = b_ref[midx:midx + 1, :]                    # (1, 128) f32
                shifted = pltpu.roll(g_f32, shift=(-delta) % LANES, axis=1)
                taps.append((shifted * mask).astype(jnp.bfloat16))
    patch = jnp.concatenate(taps, axis=0)                         # (9*cin, 128) bf16
    return _mm(w_ref, name, rows, 9 * cin, patch, b_ref, bname)


def decoder_block_kernel(x_ref, a_ref, n_ref, w_ref, b_ref, out_ref, kl_ref):
    x = x_ref[...]                  # (C, 128) f32, channels-major
    a = a_ref[...]                  # (C, 128) activations from the encoder
    eps = n_ref[...]                # (Z, 128) standard-normal noise (rsample)

    # --- phi & theta fused stage-by-stage (block-diagonal weights).
    # gelu(cat(x, a)) == cat(gelu(x), gelu(a)); theta's rows of W1F are zero over
    # the `a` half, so one matmul computes both branches' first stage.
    g2 = jnp.concatenate([_gelu_bf16(x), _gelu_bf16(a)], axis=0)  # (2C, 128) bf16
    h = _mm(w_ref, "W1F", 2 * MID, 2 * C, g2, b_ref, "B1F")       # (2MID, 128)
    h = _conv3x3(_gelu_f32(h), w_ref, "W2F", 2 * MID, b_ref, "B2F")
    h = _conv3x3(_gelu_f32(h), w_ref, "W3F", 2 * MID, b_ref, "B3F")
    pt = _mm(w_ref, "W4F", 4 * Z + C, 2 * MID, _gelu_bf16(h), b_ref, "B4F")
    q_mean, q_logstd = pt[0:Z], pt[Z:2 * Z]
    p_mean, p_logstd = pt[2 * Z:3 * Z], pt[3 * Z:4 * Z]
    x_res = pt[4 * Z:]

    # --- KL(q || p) and the reparameterized sample (exp deduplicated: 2 EUP passes).
    s_q = jnp.exp(q_logstd)
    inv_var_p = jnp.exp(-2.0 * p_logstd)
    kl = (p_logstd - q_logstd
          + 0.5 * (s_q * s_q + (q_mean - p_mean) ** 2) * inv_var_p
          - 0.5)
    z = q_mean + s_q * eps

    # --- residual stream + z projection + output res-block (res=True).
    t = x + x_res + _mm(w_ref, "ZW", C, Z, z.astype(jnp.bfloat16), b_ref, "ZB")
    r = _mm(w_ref, "RW1", MID, C, _gelu_bf16(t), b_ref, "RB1")
    r = _conv3x3(_gelu_f32(r), w_ref, "RW2", MID, b_ref, "RB2")
    r = _conv3x3(_gelu_f32(r), w_ref, "RW3", MID, b_ref, "RB3")
    r = _mm(w_ref, "RW4", C, MID, _gelu_bf16(r), b_ref, "RB4")

    out_ref[...] = r + t            # lane-dense (C, 128) store
    kl_ref[...] = kl                # (Z, 128)


@jax.jit
def decoder_block_forward(x, act, noise, wslab, bslab):
    """x, act: (C, B*H*W); noise: (Z, B*H*W) -- channels-major slabs.

    The layout is kept persistently across a VDVAE stack, so the forward path
    contains exactly one op (the pallas_call) and no layout transposes.
    Returns (out (C, B*H*W), loss_kl (Z, B*H*W)).
    """
    return pl.pallas_call(
        decoder_block_kernel,
        out_shape=(jax.ShapeDtypeStruct((C, BHW), jnp.float32),
                   jax.ShapeDtypeStruct((Z, BHW), jnp.float32)),
        grid=(N_TILES,),
        in_specs=[
            pl.BlockSpec((C, LANES), lambda i: (0, i)),
            pl.BlockSpec((C, LANES), lambda i: (0, i)),
            pl.BlockSpec((Z, LANES), lambda i: (0, i)),
            pl.BlockSpec((W_ROWS, W_COLS), lambda i: (0, 0)),   # bf16 weight slab
            pl.BlockSpec((B_ROWS, LANES), lambda i: (0, 0)),    # f32 mask/bias slab
        ],
        out_specs=(pl.BlockSpec((C, LANES), lambda i: (0, i)),
                   pl.BlockSpec((Z, LANES), lambda i: (0, i))),
        compiler_params=pltpu.CompilerParams(
            dimension_semantics=("parallel",)),   # one 128-lane tile per core on v7x
    )(x, act, noise, wslab, bslab)


# ----------------------------------------------------------------------------
# Synthetic parameters + slab packing

def make_params(key):
    """Per-branch synthetic weights in torch-equivalent layouts (see header).
    Weights are pre-rounded to bf16 values (kernel matmul operands are bf16)."""
    keys = iter(jax.random.split(key, 32))

    def normal(shape, scale=0.05):
        return scale * jax.random.normal(next(keys), shape, jnp.float32)

    def bf16_round(t):
        return t.astype(jnp.bfloat16).astype(jnp.float32)

    def block_weights(cin, cout, final_scale=1.0):
        return dict(
            w1=bf16_round(normal((MID, cin))), b1=normal((MID, 1)),
            w2=bf16_round(normal((MID, 9 * MID))), b2=normal((MID, 1)),
            w3=bf16_round(normal((MID, 9 * MID))), b3=normal((MID, 1)),
            w4=bf16_round(normal((cout, MID)) * final_scale), b4=normal((cout, 1)),
        )

    phi = block_weights(2 * C, 2 * Z)              # out: [q_mean | q_logstd]
    theta = block_weights(C, C + 2 * Z)            # out: [p_mean | p_logstd | res]
    zproj = dict(w=bf16_round(normal((C, Z)) * FINAL_SCALE), b=normal((C, 1)))
    res = block_weights(C, C, final_scale=FINAL_SCALE)
    return phi, theta, zproj, res


def fuse_and_pack(phi, theta, zproj, res):
    """Block-diagonally fuse phi/theta stage weights and pack everything into
    one bf16 weight slab + one f32 mask/bias slab (2 weight DMAs instead of ~30)."""
    f32 = np.float32
    phi = {k: np.asarray(v, f32) for k, v in phi.items()}
    theta = {k: np.asarray(v, f32) for k, v in theta.items()}
    zw, zb = np.asarray(zproj["w"], f32), np.asarray(zproj["b"], f32)
    res = {k: np.asarray(v, f32) for k, v in res.items()}

    # Stage 1: theta only sees the first C channels of cat(gelu(x), gelu(a)).
    w1f = np.concatenate(
        [phi["w1"],
         np.concatenate([theta["w1"], np.zeros((MID, C), f32)], axis=1)], axis=0)

    def fuse3x3(pw, tw):
        out = np.zeros((2 * MID, 9, 2 * MID), f32)
        out[:MID, :, :MID] = pw.reshape(MID, 9, MID)
        out[MID:, :, MID:] = tw.reshape(MID, 9, MID)
        return out.reshape(2 * MID, 18 * MID)

    w2f = fuse3x3(phi["w2"], theta["w2"])
    w3f = fuse3x3(phi["w3"], theta["w3"])

    w4f = np.zeros((4 * Z + C, 2 * MID), f32)
    w4f[:2 * Z, :MID] = phi["w4"]          # rows -> (q_mean, q_logstd)
    w4f[2 * Z:, MID:] = theta["w4"]        # rows -> (p_mean, p_logstd, res)

    weights = dict(W1F=w1f, W2F=w2f, W3F=w3f, W4F=w4f, ZW=zw,
                   RW1=res["w1"], RW2=res["w2"], RW3=res["w3"], RW4=res["w4"])
    wslab = np.zeros((W_ROWS, W_COLS), f32)
    for name, val in weights.items():
        r, c = val.shape
        wslab[W_OFF[name]:W_OFF[name] + r, :c] = val

    biases = dict(
        B1F=np.concatenate([phi["b1"], theta["b1"]], axis=0),
        B2F=np.concatenate([phi["b2"], theta["b2"]], axis=0),
        B3F=np.concatenate([phi["b3"], theta["b3"]], axis=0),
        B4F=np.concatenate([phi["b4"], theta["b4"]], axis=0),
        ZB=zb, RB1=res["b1"], RB2=res["b2"], RB3=res["b3"], RB4=res["b4"])
    bslab = np.zeros((B_ROWS, LANES), f32)
    for name, val in biases.items():
        bslab[B_OFF[name]:B_OFF[name] + val.shape[0], :] = val   # lane pre-broadcast

    # 3x3 border masks: lane l -> pixel (l % HW) of one of the whole images in a tile.
    lane = np.arange(LANES)
    hpos, wpos = (lane % HW) // W, lane % W
    for kh in range(3):
        for kw in range(3):
            ok = ((hpos + kh - 1 >= 0) & (hpos + kh - 1 < H)
                  & (wpos + kw - 1 >= 0) & (wpos + kw - 1 < W))
            bslab[B_OFF["MASK"] + kh * 3 + kw, :] = ok

    return jnp.asarray(wslab, jnp.bfloat16), jnp.asarray(bslab)


# ----------------------------------------------------------------------------
# Pure-JAX f32 reference (lax.conv) of DecoderBlock.forward, for checking.

def reference_forward(x_cm, a_cm, eps_cm, phi, theta, zproj, res):
    def to_nchw(t, ch):
        return t.reshape(ch, B, H, W).transpose(1, 0, 2, 3)

    def to_cm(t):
        return t.transpose(1, 0, 2, 3).reshape(t.shape[1], BHW)

    def gelu(v):
        return jax.nn.gelu(v, approximate=True)

    def conv1x1(v, w, b):
        return jnp.einsum("oi,nihw->nohw", w, v) + b[None, :, :, None]

    def conv3x3(v, w, b):
        cout, cin = w.shape[0], w.shape[1] // 9
        w4 = w.reshape(cout, 3, 3, cin).transpose(0, 3, 1, 2)     # OIHW
        out = jax.lax.conv_general_dilated(
            v, w4, (1, 1), ((1, 1), (1, 1)),
            dimension_numbers=("NCHW", "OIHW", "NCHW"))
        return out + b[None, :, :, None]

    def block(v, p, residual=False):
        h = conv1x1(gelu(v), p["w1"], p["b1"])
        h = conv3x3(gelu(h), p["w2"], p["b2"])
        h = conv3x3(gelu(h), p["w3"], p["b3"])
        h = conv1x1(gelu(h), p["w4"], p["b4"])
        return h + v if residual else h

    x, a, eps = to_nchw(x_cm, C), to_nchw(a_cm, C), to_nchw(eps_cm, Z)
    q_mean, q_logstd = jnp.split(block(jnp.concatenate([x, a], axis=1), phi), 2, axis=1)
    th = block(x, theta)
    p_mean, p_logstd, x_res = th[:, :Z], th[:, Z:2 * Z], th[:, 2 * Z:]
    kl = (p_logstd - q_logstd
          + 0.5 * (jnp.exp(2.0 * q_logstd) + (q_mean - p_mean) ** 2)
          * jnp.exp(-2.0 * p_logstd) - 0.5)
    z = q_mean + jnp.exp(q_logstd) * eps
    t = x + x_res + conv1x1(z, zproj["w"], zproj["b"])
    out = block(t, res, residual=True)
    return to_cm(out), to_cm(kl)


# ----------------------------------------------------------------------------
if __name__ == "__main__":
    key = jax.random.PRNGKey(0)
    k_x, k_a, k_n, k_p = jax.random.split(key, 4)
    x = jax.random.normal(k_x, (C, BHW), jnp.float32)      # channels-major slabs
    act = jax.random.normal(k_a, (C, BHW), jnp.float32)
    noise = jax.random.normal(k_n, (Z, BHW), jnp.float32)  # rsample eps ~ N(0, 1)
    phi, theta, zproj, res = make_params(k_p)
    wslab, bslab = fuse_and_pack(phi, theta, zproj, res)   # one-time packing

    out, loss_kl = decoder_block_forward(x, act, noise, wslab, bslab)
    jax.block_until_ready((out, loss_kl))
    assert out.shape == (C, BHW) and loss_kl.shape == (Z, BHW)
    assert bool(jnp.all(jnp.isfinite(out))) and bool(jnp.all(jnp.isfinite(loss_kl)))

    # Cross-check against the pure-JAX f32 reference (catches roll-sign, fusion,
    # packing and split-order bugs, not just NaNs).  Tolerance covers the bf16
    # matmul operands / bf16 GELU inside the kernel.
    ref_out, ref_kl = reference_forward(x, act, noise, phi, theta, zproj, res)
    np.testing.assert_allclose(np.asarray(out), np.asarray(ref_out),
                               rtol=0.05, atol=0.03)
    np.testing.assert_allclose(np.asarray(loss_kl), np.asarray(ref_kl),
                               rtol=0.05, atol=0.03)
    print("KERNEL_OK")
</pallas_src>

<mosaic_0001>
module attributes {stable_mosaic.version = 11 : i64} {
  func.func @decoder_block_kernel(%arg0: i32, %arg1: memref<32x128xf32, #tpu.memory_space<vmem>>, %arg2: memref<32x128xf32, #tpu.memory_space<vmem>>, %arg3: memref<16x128xf32, #tpu.memory_space<vmem>>, %arg4: memref<256x144xbf16, #tpu.memory_space<vmem>>, %arg5: memref<248x128xf32, #tpu.memory_space<vmem>>, %arg6: memref<32x128xf32, #tpu.memory_space<vmem>>, %arg7: memref<16x128xf32, #tpu.memory_space<vmem>>) attributes {dimension_semantics = [#tpu.dimension_semantics<parallel>], iteration_bounds = array<i64: 2>, scalar_prefetch = 0 : i64, scratch_operands = 0 : i64, tpu.core_type = #tpu.core_type<tc>, window_params = [{transform_indices = @transform_0, window_bounds = array<i64: 32, 128>}, {transform_indices = @transform_1, window_bounds = array<i64: 32, 128>}, {transform_indices = @transform_2, window_bounds = array<i64: 16, 128>}, {pipeline_mode = #tpu.pipeline_mode<synchronous>, transform_indices = @transform_3, window_bounds = array<i64: 256, 144>}, {pipeline_mode = #tpu.pipeline_mode<synchronous>, transform_indices = @transform_4, window_bounds = array<i64: 248, 128>}, {transform_indices = @transform_5, window_bounds = array<i64: 32, 128>}, {transform_indices = @transform_6, window_bounds = array<i64: 16, 128>}]} {
    %c0 = arith.constant 0 : index
    %c0_0 = arith.constant 0 : index
    %0 = vector.load %arg1[%c0, %c0_0] : memref<32x128xf32, #tpu.memory_space<vmem>>, vector<32x128xf32>
    %c0_1 = arith.constant 0 : index
    %c0_2 = arith.constant 0 : index
    %1 = vector.load %arg2[%c0_1, %c0_2] : memref<32x128xf32, #tpu.memory_space<vmem>>, vector<32x128xf32>
    %c0_3 = arith.constant 0 : index
    %c0_4 = arith.constant 0 : index
    %2 = vector.load %arg3[%c0_3, %c0_4] : memref<16x128xf32, #tpu.memory_space<vmem>>, vector<16x128xf32>
    %3 = arith.truncf %0 : vector<32x128xf32> to vector<32x128xbf16>
    %4 = arith.mulf %3, %3 : vector<32x128xbf16>
    %5 = arith.mulf %3, %4 : vector<32x128xbf16>
    %cst = arith.constant 4.467770e-02 : bf16
    %6 = vector.broadcast %cst : bf16 to vector<32x128xbf16>
    %7 = arith.mulf %6, %5 : vector<32x128xbf16>
    %8 = arith.addf %3, %7 : vector<32x128xbf16>
    %cst_5 = arith.constant 7.968750e-01 : bf16
    %9 = vector.broadcast %cst_5 : bf16 to vector<32x128xbf16>
    %10 = arith.mulf %9, %8 : vector<32x128xbf16>
    %11 = math.tanh %10 : vector<32x128xbf16>
    %cst_6 = arith.constant 1.000000e+00 : bf16
    %12 = vector.broadcast %cst_6 : bf16 to vector<32x128xbf16>
    %13 = arith.addf %12, %11 : vector<32x128xbf16>
    %cst_7 = arith.constant 5.000000e-01 : bf16
    %14 = vector.broadcast %cst_7 : bf16 to vector<32x128xbf16>
    %15 = arith.mulf %14, %13 : vector<32x128xbf16>
    %16 = arith.mulf %3, %15 : vector<32x128xbf16>
    %17 = arith.truncf %1 : vector<32x128xf32> to vector<32x128xbf16>
    %18 = arith.mulf %17, %17 : vector<32x128xbf16>
    %19 = arith.mulf %17, %18 : vector<32x128xbf16>
    %cst_8 = arith.constant 4.467770e-02 : bf16
    %20 = vector.broadcast %cst_8 : bf16 to vector<32x128xbf16>
    %21 = arith.mulf %20, %19 : vector<32x128xbf16>
    %22 = arith.addf %17, %21 : vector<32x128xbf16>
    %cst_9 = arith.constant 7.968750e-01 : bf16
    %23 = vector.broadcast %cst_9 : bf16 to vector<32x128xbf16>
    %24 = arith.mulf %23, %22 : vector<32x128xbf16>
    %25 = math.tanh %24 : vector<32x128xbf16>
    %cst_10 = arith.constant 1.000000e+00 : bf16
    %26 = vector.broadcast %cst_10 : bf16 to vector<32x128xbf16>
    %27 = arith.addf %26, %25 : vector<32x128xbf16>
    %cst_11 = arith.constant 5.000000e-01 : bf16
    %28 = vector.broadcast %cst_11 : bf16 to vector<32x128xbf16>
    %29 = arith.mulf %28, %27 : vector<32x128xbf16>
    %30 = arith.mulf %17, %29 : vector<32x128xbf16>
    %31 = tpu.concatenate %16, %30 in 0 : vector<32x128xbf16>, vector<32x128xbf16> -> vector<64x128xbf16>
    %c0_12 = arith.constant 0 : index
    %c0_13 = arith.constant 0 : index
    %32 = vector.load %arg4[%c0_12, %c0_13] : memref<256x144xbf16, #tpu.memory_space<vmem>>, vector<16x64xbf16>
    %cst_14 = arith.constant dense<0.000000e+00> : vector<16x128xf32>
    %33 = tpu.matmul %32, %31, %cst_14 {dimension_numbers = #tpu.dot_dimension_numbers<[1], [0], [0], [1], [0, 0, 1, 1], [], []>} : vector<16x64xbf16>, vector<64x128xbf16>, vector<16x128xf32> -> vector<16x128xf32>
    %c16 = arith.constant 16 : index
    %c0_15 = arith.constant 0 : index
    %34 = vector.load %arg5[%c16, %c0_15] : memref<248x128xf32, #tpu.memory_space<vmem>>, vector<16x128xf32>
    %35 = arith.addf %33, %34 : vector<16x128xf32>
    %36 = arith.mulf %35, %35 : vector<16x128xf32>
    %37 = arith.mulf %35, %36 : vector<16x128xf32>
    %cst_16 = arith.constant 4.471500e-02 : f32
    %38 = vector.broadcast %cst_16 : f32 to vector<16x128xf32>
    %39 = arith.mulf %38, %37 : vector<16x128xf32>
    %40 = arith.addf %35, %39 : vector<16x128xf32>
    %cst_17 = arith.constant 0.797884583 : f32
    %41 = vector.broadcast %cst_17 : f32 to vector<16x128xf32>
    %42 = arith.mulf %41, %40 : vector<16x128xf32>
    %43 = math.tanh %42 : vector<16x128xf32>
    %cst_18 = arith.constant 1.000000e+00 : f32
    %44 = vector.broadcast %cst_18 : f32 to vector<16x128xf32>
    %45 = arith.addf %44, %43 : vector<16x128xf32>
    %cst_19 = arith.constant 5.000000e-01 : f32
    %46 = vector.broadcast %cst_19 : f32 to vector<16x128xf32>
    %47 = arith.mulf %46, %45 : vector<16x128xf32>
    %48 = arith.mulf %35, %47 : vector<16x128xf32>
    %c0_20 = arith.constant 0 : index
    %c0_21 = arith.constant 0 : index
    %49 = vector.load %arg5[%c0_20, %c0_21] : memref<248x128xf32, #tpu.memory_space<vmem>>, vector<1x128xf32>
    %c9_i32 = arith.constant 9 : i32
    %50 = tpu.dynamic_rotate %48 by %c9_i32 dim 1 : vector<16x128xf32>, i32 -> vector<16x128xf32>
    %51 = vector.broadcast %49 : vector<1x128xf32> to vector<16x128xf32>
    %52 = arith.mulf %50, %51 : vector<16x128xf32>
    %53 = arith.truncf %52 : vector<16x128xf32> to vector<16x128xbf16>
    %c1 = arith.constant 1 : index
    %c0_22 = arith.constant 0 : index
    %54 = vector.load %arg5[%c1, %c0_22] : memref<248x128xf32, #tpu.memory_space<vmem>>, vector<1x128xf32>
    %c8_i32 = arith.constant 8 : i32
    %55 = tpu.dynamic_rotate %48 by %c8_i32 dim 1 : vector<16x128xf32>, i32 -> vector<16x128xf32>
    %56 = vector.broadcast %54 : vector<1x128xf32> to vector<16x128xf32>
    %57 = arith.mulf %55, %56 : vector<16x128xf32>
    %58 = arith.truncf %57 : vector<16x128xf32> to vector<16x128xbf16>
    %c2 = arith.constant 2 : index
    %c0_23 = arith.constant 0 : index
    %59 = vector.load %arg5[%c2, %c0_23] : memref<248x128xf32, #tpu.memory_space<vmem>>, vector<1x128xf32>
    %c7_i32 = arith.constant 7 : i32
    %60 = tpu.dynamic_rotate %48 by %c7_i32 dim 1 : vector<16x128xf32>, i32 -> vector<16x128xf32>
    %61 = vector.broadcast %59 : vector<1x128xf32> to vector<16x128xf32>
    %62 = arith.mulf %60, %61 : vector<16x128xf32>
    %63 = arith.truncf %62 : vector<16x128xf32> to vector<16x128xbf16>
    %c3 = arith.constant 3 : index
    %c0_24 = arith.constant 0 : index
    %64 = vector.load %arg5[%c3, %c0_24] : memref<248x128xf32, #tpu.memory_space<vmem>>, vector<1x128xf32>
    %c1_i32 = arith.constant 1 : i32
    %65 = tpu.dynamic_rotate %48 by %c1_i32 dim 1 : vector<16x128xf32>, i32 -> vector<16x128xf32>
    %66 = vector.broadcast %64 : vector<1x128xf32> to vector<16x128xf32>
    %67 = arith.mulf %65, %66 : vector<16x128xf32>
    %68 = arith.truncf %67 : vector<16x128xf32> to vector<16x128xbf16>
    %69 = arith.truncf %48 : vector<16x128xf32> to vector<16x128xbf16>
    %c5 = arith.constant 5 : index
    %c0_25 = arith.constant 0 : index
    %70 = vector.load %arg5[%c5, %c0_25] : memref<248x128xf32, #tpu.memory_space<vmem>>, vector<1x128xf32>
    %c127_i32 = arith.constant 127 : i32
    %71 = tpu.dynamic_rotate %48 by %c127_i32 dim 1 : vector<16x128xf32>, i32 -> vector<16x128xf32>
    %72 = vector.broadcast %70 : vector<1x128xf32> to vector<16x128xf32>
    %73 = arith.mulf %71, %72 : vector<16x128xf32>
    %74 = arith.truncf %73 : vector<16x128xf32> to vector<16x128xbf16>
    %c6 = arith.constant 6 : index
    %c0_26 = arith.constant 0 : index
    %75 = vector.load %arg5[%c6, %c0_26] : memref<248x128xf32, #tpu.memory_space<vmem>>, vector<1x128xf32>
    %c121_i32 = arith.constant 121 : i32
    %76 = tpu.dynamic_rotate %48 by %c121_i32 dim 1 : vector<16x128xf32>, i32 -> vector<16x128xf32>
    %77 = vector.broadcast %75 : vector<1x128xf32> to vector<16x128xf32>
    %78 = arith.mulf %76, %77 : vector<16x128xf32>
    %79 = arith.truncf %78 : vector<16x128xf32> to vector<16x128xbf16>
    %c7 = arith.constant 7 : index
    %c0_27 = arith.constant 0 : index
    %80 = vector.load %arg5[%c7, %c0_27] : memref<248x128xf32, #tpu.memory_space<vmem>>, vector<1x128xf32>
    %c120_i32 = arith.constant 120 : i32
    %81 = tpu.dynamic_rotate %48 by %c120_i32 dim 1 : vector<16x128xf32>, i32 -> vector<16x128xf32>
    %82 = vector.broadcast %80 : vector<1x128xf32> to vector<16x128xf32>
    %83 = arith.mulf %81, %82 : vector<16x128xf32>
    %84 = arith.truncf %83 : vector<16x128xf32> to vector<16x128xbf16>
    %c8 = arith.constant 8 : index
    %c0_28 = arith.constant 0 : index
    %85 = vector.load %arg5[%c8, %c0_28] : memref<248x128xf32, #tpu.memory_space<vmem>>, vector<1x128xf32>
    %c119_i32 = arith.constant 119 : i32
    %86 = tpu.dynamic_rotate %48 by %c119_i32 dim 1 : vector<16x128xf32>, i32 -> vector<16x128xf32>
    %87 = vector.broadcast %85 : vector<1x128xf32> to vector<16x128xf32>
    %88 = arith.mulf %86, %87 : vector<16x128xf32>
    %89 = arith.truncf %88 : vector<16x128xf32> to vector<16x128xbf16>
    %90 = tpu.concatenate %53, %58, %63, %68, %69, %74, %79, %84, %89 in 0 : vector<16x128xbf16>, vector<16x128xbf16>, vector<16x128xbf16>, vector<16x128xbf16>, vector<16x128xbf16>, vector<16x128xbf16>, vector<16x128xbf16>, vector<16x128xbf16>, vector<16x128xbf16> -> vector<144x128xbf16>
    %c16_29 = arith.constant 16 : index
    %c0_30 = arith.constant 0 : index
    %91 = vector.load %arg4[%c16_29, %c0_30] : memref<256x144xbf16, #tpu.memory_space<vmem>>, vector<16x144xbf16>
    %cst_31 = arith.constant dense<0.000000e+00> : vector<16x128xf32>
    %92 = tpu.matmul %91, %90, %cst_31 {dimension_numbers = #tpu.dot_dimension_numbers<[1], [0], [0], [1], [0, 0, 1, 1], [], []>} : vector<16x144xbf16>, vector<144x128xbf16>, vector<16x128xf32> -> vector<16x128xf32>
    %c32 = arith.constant 32 : index
    %c0_32 = arith.constant 0 : index
    %93 = vector.load %arg5[%c32, %c0_32] : memref<248x128xf32, #tpu.memory_space<vmem>>, vector<16x128xf32>
    %94 = arith.addf %92, %93 : vector<16x128xf32>
    %95 = arith.mulf %94, %94 : vector<16x128xf32>
    %96 = arith.mulf %94, %95 : vector<16x128xf32>
    %cst_33 = arith.constant 4.471500e-02 : f32
    %97 = vector.broadcast %cst_33 : f32 to vector<16x128xf32>
    %98 = arith.mulf %97, %96 : vector<16x128xf32>
    %99 = arith.addf %94, %98 : vector<16x128xf32>
    %cst_34 = arith.constant 0.797884583 : f32
    %100 = vector.broadcast %cst_34 : f32 to vector<16x128xf32>
    %101 = arith.mulf %100, %99 : vector<16x128xf32>
    %102 = math.tanh %101 : vector<16x128xf32>
    %cst_35 = arith.constant 1.000000e+00 : f32
    %103 = vector.broadcast %cst_35 : f32 to vector<16x128xf32>
    %104 = arith.addf %103, %102 : vector<16x128xf32>
    %cst_36 = arith.constant 5.000000e-01 : f32
    %105 = vector.broadcast %cst_36 : f32 to vector<16x128xf32>
    %106 = arith.mulf %105, %104 : vector<16x128xf32>
    %107 = arith.mulf %94, %106 : vector<16x128xf32>
    %c0_37 = arith.constant 0 : index
    %c0_38 = arith.constant 0 : index
    %108 = vector.load %arg5[%c0_37, %c0_38] : memref<248x128xf32, #tpu.memory_space<vmem>>, vector<1x128xf32>
    %c9_i32_39 = arith.constant 9 : i32
    %109 = tpu.dynamic_rotate %107 by %c9_i32_39 dim 1 : vector<16x128xf32>, i32 -> vector<16x128xf32>
    %110 = vector.broadcast %108 : vector<1x128xf32> to vector<16x128xf32>
    %111 = arith.mulf %109, %110 : vector<16x128xf32>
    %112 = arith.truncf %111 : vector<16x128xf32> to vector<16x128xbf16>
    %c1_40 = arith.constant 1 : index
    %c0_41 = arith.constant 0 : index
    %113 = vector.load %arg5[%c1_40, %c0_41] : memref<248x128xf32, #tpu.memory_space<vmem>>, vector<1x128xf32>
    %c8_i32_42 = arith.constant 8 : i32
    %114 = tpu.dynamic_rotate %107 by %c8_i32_42 dim 1 : vector<16x128xf32>, i32 -> vector<16x128xf32>
    %115 = vector.broadcast %113 : vector<1x128xf32> to vector<16x128xf32>
    %116 = arith.mulf %114, %115 : vector<16x128xf32>
    %117 = arith.truncf %116 : vector<16x128xf32> to vector<16x128xbf16>
    %c2_43 = arith.constant 2 : index
    %c0_44 = arith.constant 0 : index
    %118 = vector.load %arg5[%c2_43, %c0_44] : memref<248x128xf32, #tpu.memory_space<vmem>>, vector<1x128xf32>
    %c7_i32_45 = arith.constant 7 : i32
    %119 = tpu.dynamic_rotate %107 by %c7_i32_45 dim 1 : vector<16x128xf32>, i32 -> vector<16x128xf32>
    %120 = vector.broadcast %118 : vector<1x128xf32> to vector<16x128xf32>
    %121 = arith.mulf %119, %120 : vector<16x128xf32>
    %122 = arith.truncf %121 : vector<16x128xf32> to vector<16x128xbf16>
    %c3_46 = arith.constant 3 : index
    %c0_47 = arith.constant 0 : index
    %123 = vector.load %arg5[%c3_46, %c0_47] : memref<248x128xf32, #tpu.memory_space<vmem>>, vector<1x128xf32>
    %c1_i32_48 = arith.constant 1 : i32
    %124 = tpu.dynamic_rotate %107 by %c1_i32_48 dim 1 : vector<16x128xf32>, i32 -> vector<16x128xf32>
    %125 = vector.broadcast %123 : vector<1x128xf32> to vector<16x128xf32>
    %126 = arith.mulf %124, %125 : vector<16x128xf32>
    %127 = arith.truncf %126 : vector<16x128xf32> to vector<16x128xbf16>
    %128 = arith.truncf %107 : vector<16x128xf32> to vector<16x128xbf16>
    %c5_49 = arith.constant 5 : index
    %c0_50 = arith.constant 0 : index
    %129 = vector.load %arg5[%c5_49, %c0_50] : memref<248x128xf32, #tpu.memory_space<vmem>>, vector<1x128xf32>
    %c127_i32_51 = arith.constant 127 : i32
    %130 = tpu.dynamic_rotate %107 by %c127_i32_51 dim 1 : vector<16x128xf32>, i32 -> vector<16x128xf32>
    %131 = vector.broadcast %129 : vector<1x128xf32> to vector<16x128xf32>
    %132 = arith.mulf %130, %131 : vector<16x128xf32>
    %133 = arith.truncf %132 : vector<16x128xf32> to vector<16x128xbf16>
    %c6_52 = arith.constant 6 : index
    %c0_53 = arith.constant 0 : index
    %134 = vector.load %arg5[%c6_52, %c0_53] : memref<248x128xf32, #tpu.memory_space<vmem>>, vector<1x128xf32>
    %c121_i32_54 = arith.constant 121 : i32
    %135 = tpu.dynamic_rotate %107 by %c121_i32_54 dim 1 : vector<16x128xf32>, i32 -> vector<16x128xf32>
    %136 = vector.broadcast %134 : vector<1x128xf32> to vector<16x128xf32>
    %137 = arith.mulf %135, %136 : vector<16x128xf32>
    %138 = arith.truncf %137 : vector<16x128xf32> to vector<16x128xbf16>
    %c7_55 = arith.constant 7 : index
    %c0_56 = arith.constant 0 : index
    %139 = vector.load %arg5[%c7_55, %c0_56] : memref<248x128xf32, #tpu.memory_space<vmem>>, vector<1x128xf32>
    %c120_i32_57 = arith.constant 120 : i32
    %140 = tpu.dynamic_rotate %107 by %c120_i32_57 dim 1 : vector<16x128xf32>, i32 -> vector<16x128xf32>
    %141 = vector.broadcast %139 : vector<1x128xf32> to vector<16x128xf32>
    %142 = arith.mulf %140, %141 : vector<16x128xf32>
    %143 = arith.truncf %142 : vector<16x128xf32> to vector<16x128xbf16>
    %c8_58 = arith.constant 8 : index
    %c0_59 = arith.constant 0 : index
    %144 = vector.load %arg5[%c8_58, %c0_59] : memref<248x128xf32, #tpu.memory_space<vmem>>, vector<1x128xf32>
    %c119_i32_60 = arith.constant 119 : i32
    %145 = tpu.dynamic_rotate %107 by %c119_i32_60 dim 1 : vector<16x128xf32>, i32 -> vector<16x128xf32>
    %146 = vector.broadcast %144 : vector<1x128xf32> to vector<16x128xf32>
    %147 = arith.mulf %145, %146 : vector<16x128xf32>
    %148 = arith.truncf %147 : vector<16x128xf32> to vector<16x128xbf16>
    %149 = tpu.concatenate %112, %117, %122, %127, %128, %133, %138, %143, %148 in 0 : vector<16x128xbf16>, vector<16x128xbf16>, vector<16x128xbf16>, vector<16x128xbf16>, vector<16x128xbf16>, vector<16x128xbf16>, vector<16x128xbf16>, vector<16x128xbf16>, vector<16x128xbf16> -> vector<144x128xbf16>
    %c32_61 = arith.constant 32 : index
    %c0_62 = arith.constant 0 : index
    %150 = vector.load %arg4[%c32_61, %c0_62] : memref<256x144xbf16, #tpu.memory_space<vmem>>, vector<16x144xbf16>
    %cst_63 = arith.constant dense<0.000000e+00> : vector<16x128xf32>
    %151 = tpu.matmul %150, %149, %cst_63 {dimension_numbers = #tpu.dot_dimension_numbers<[1], [0], [0], [1], [0, 0, 1, 1], [], []>} : vector<16x144xbf16>, vector<144x128xbf16>, vector<16x128xf32> -> vector<16x128xf32>
    %c48 = arith.constant 48 : index
    %c0_64 = arith.constant 0 : index
    %152 = vector.load %arg5[%c48, %c0_64] : memref<248x128xf32, #tpu.memory_space<vmem>>, vector<16x128xf32>
    %153 = arith.addf %151, %152 : vector<16x128xf32>
    %154 = arith.truncf %153 : vector<16x128xf32> to vector<16x128xbf16>
    %155 = arith.mulf %154, %154 : vector<16x128xbf16>
    %156 = arith.mulf %154, %155 : vector<16x128xbf16>
    %cst_65 = arith.constant 4.467770e-02 : bf16
    %157 = vector.broadcast %cst_65 : bf16 to vector<16x128xbf16>
    %158 = arith.mulf %157, %156 : vector<16x128xbf16>
    %159 = arith.addf %154, %158 : vector<16x128xbf16>
    %cst_66 = arith.constant 7.968750e-01 : bf16
    %160 = vector.broadcast %cst_66 : bf16 to vector<16x128xbf16>
    %161 = arith.mulf %160, %159 : vector<16x128xbf16>
    %162 = math.tanh %161 : vector<16x128xbf16>
    %cst_67 = arith.constant 1.000000e+00 : bf16
    %163 = vector.broadcast %cst_67 : bf16 to vector<16x128xbf16>
    %164 = arith.addf %163, %162 : vector<16x128xbf16>
    %cst_68 = arith.constant 5.000000e-01 : bf16
    %165 = vector.broadcast %cst_68 : bf16 to vector<16x128xbf16>
    %166 = arith.mulf %165, %164 : vector<16x128xbf16>
    %167 = arith.mulf %154, %166 : vector<16x128xbf16>
    %c48_69 = arith.constant 48 : index
    %c0_70 = arith.constant 0 : index
    %168 = vector.load %arg4[%c48_69, %c0_70] : memref<256x144xbf16, #tpu.memory_space<vmem>>, vector<96x16xbf16>
    %cst_71 = arith.constant dense<0.000000e+00> : vector<96x128xf32>
    %169 = tpu.matmul %168, %167, %cst_71 {dimension_numbers = #tpu.dot_dimension_numbers<[1], [0], [0], [1], [0, 0, 1, 1], [], []>} : vector<96x16xbf16>, vector<16x128xbf16>, vector<96x128xf32> -> vector<96x128xf32>
    %c64 = arith.constant 64 : index
    %c0_72 = arith.constant 0 : index
    %170 = vector.load %arg5[%c64, %c0_72] : memref<248x128xf32, #tpu.memory_space<vmem>>, vector<96x128xf32>
    %171 = arith.addf %169, %170 : vector<96x128xf32>
    %172 = vector.extract_strided_slice %171 {offsets = [0, 0], sizes = [16, 128], strides = [1, 1]} : vector<96x128xf32> to vector<16x128xf32>
    %173 = vector.extract_strided_slice %171 {offsets = [16, 0], sizes = [16, 128], strides = [1, 1]} : vector<96x128xf32> to vector<16x128xf32>
    %174 = vector.extract_strided_slice %171 {offsets = [32, 0], sizes = [16, 128], strides = [1, 1]} : vector<96x128xf32> to vector<16x128xf32>
    %175 = vector.extract_strided_slice %171 {offsets = [48, 0], sizes = [16, 128], strides = [1, 1]} : vector<96x128xf32> to vector<16x128xf32>
    %176 = vector.extract_strided_slice %171 {offsets = [64, 0], sizes = [32, 128], strides = [1, 1]} : vector<96x128xf32> to vector<32x128xf32>
    %177 = math.exp %173 : vector<16x128xf32>
    %cst_73 = arith.constant -2.000000e+00 : f32
    %178 = vector.broadcast %cst_73 : f32 to vector<16x128xf32>
    %179 = arith.mulf %178, %175 : vector<16x128xf32>
    %180 = math.exp %179 : vector<16x128xf32>
    %181 = arith.subf %175, %173 : vector<16x128xf32>
    %182 = arith.mulf %177, %177 : vector<16x128xf32>
    %183 = arith.subf %172, %174 : vector<16x128xf32>
    %184 = arith.mulf %183, %183 : vector<16x128xf32>
    %185 = arith.addf %182, %184 : vector<16x128xf32>
    %cst_74 = arith.constant 5.000000e-01 : f32
    %186 = vector.broadcast %cst_74 : f32 to vector<16x128xf32>
    %187 = arith.mulf %186, %185 : vector<16x128xf32>
    %188 = arith.mulf %187, %180 : vector<16x128xf32>
    %189 = arith.addf %181, %188 : vector<16x128xf32>
    %cst_75 = arith.constant 5.000000e-01 : f32
    %190 = vector.broadcast %cst_75 : f32 to vector<16x128xf32>
    %191 = arith.subf %189, %190 : vector<16x128xf32>
    %192 = arith.mulf %177, %2 : vector<16x128xf32>
    %193 = arith.addf %172, %192 : vector<16x128xf32>
    %194 = arith.addf %0, %176 : vector<32x128xf32>
    %195 = arith.truncf %193 : vector<16x128xf32> to vector<16x128xbf16>
    %c144 = arith.constant 144 : index
    %c0_76 = arith.constant 0 : index
    %196 = vector.load %arg4[%c144, %c0_76] : memref<256x144xbf16, #tpu.memory_space<vmem>>, vector<32x16xbf16>
    %cst_77 = arith.constant dense<0.000000e+00> : vector<32x128xf32>
    %197 = tpu.matmul %196, %195, %cst_77 {dimension_numbers = #tpu.dot_dimension_numbers<[1], [0], [0], [1], [0, 0, 1, 1], [], []>} : vector<32x16xbf16>, vector<16x128xbf16>, vector<32x128xf32> -> vector<32x128xf32>
    %c160 = arith.constant 160 : index
    %c0_78 = arith.constant 0 : index
    %198 = vector.load %arg5[%c160, %c0_78] : memref<248x128xf32, #tpu.memory_space<vmem>>, vector<32x128xf32>
    %199 = arith.addf %197, %198 : vector<32x128xf32>
    %200 = arith.addf %194, %199 : vector<32x128xf32>
    %201 = arith.truncf %200 : vector<32x128xf32> to vector<32x128xbf16>
    %202 = arith.mulf %201, %201 : vector<32x128xbf16>
    %203 = arith.mulf %201, %202 : vector<32x128xbf16>
    %cst_79 = arith.constant 4.467770e-02 : bf16
    %204 = vector.broadcast %cst_79 : bf16 to vector<32x128xbf16>
    %205 = arith.mulf %204, %203 : vector<32x128xbf16>
    %206 = arith.addf %201, %205 : vector<32x128xbf16>
    %cst_80 = arith.constant 7.968750e-01 : bf16
    %207 = vector.broadcast %cst_80 : bf16 to vector<32x128xbf16>
    %208 = arith.mulf %207, %206 : vector<32x128xbf16>
    %209 = math.tanh %208 : vector<32x128xbf16>
    %cst_81 = arith.constant 1.000000e+00 : bf16
    %210 = vector.broadcast %cst_81 : bf16 to vector<32x128xbf16>
    %211 = arith.addf %210, %209 : vector<32x128xbf16>
    %cst_82 = arith.constant 5.000000e-01 : bf16
    %212 = vector.broadcast %cst_82 : bf16 to vector<32x128xbf16>
    %213 = arith.mulf %212, %211 : vector<32x128xbf16>
    %214 = arith.mulf %201, %213 : vector<32x128xbf16>
    %c176 = arith.constant 176 : index
    %c0_83 = arith.constant 0 : index
    %215 = vector.load %arg4[%c176, %c0_83] : memref<256x144xbf16, #tpu.memory_space<vmem>>, vector<8x32xbf16>
    %cst_84 = arith.constant dense<0.000000e+00> : vector<8x128xf32>
    %216 = tpu.matmul %215, %214, %cst_84 {dimension_numbers = #tpu.dot_dimension_numbers<[1], [0], [0], [1], [0, 0, 1, 1], [], []>} : vector<8x32xbf16>, vector<32x128xbf16>, vector<8x128xf32> -> vector<8x128xf32>
    %c192 = arith.constant 192 : index
    %c0_85 = arith.constant 0 : index
    %217 = vector.load %arg5[%c192, %c0_85] : memref<248x128xf32, #tpu.memory_space<vmem>>, vector<8x128xf32>
    %218 = arith.addf %216, %217 : vector<8x128xf32>
    %219 = arith.mulf %218, %218 : vector<8x128xf32>
    %220 = arith.mulf %218, %219 : vector<8x128xf32>
    %cst_86 = arith.constant 4.471500e-02 : f32
    %221 = vector.broadcast %cst_86 : f32 to vector<8x128xf32>
    %222 = arith.mulf %221, %220 : vector<8x128xf32>
    %223 = arith.addf %218, %222 : vector<8x128xf32>
    %cst_87 = arith.constant 0.797884583 : f32
    %224 = vector.broadcast %cst_87 : f32 to vector<8x128xf32>
    %225 = arith.mulf %224, %223 : vector<8x128xf32>
    %226 = math.tanh %225 : vector<8x128xf32>
    %cst_88 = arith.constant 1.000000e+00 : f32
    %227 = vector.broadcast %cst_88 : f32 to vector<8x128xf32>
    %228 = arith.addf %227, %226 : vector<8x128xf32>
    %cst_89 = arith.constant 5.000000e-01 : f32
    %229 = vector.broadcast %cst_89 : f32 to vector<8x128xf32>
    %230 = arith.mulf %229, %228 : vector<8x128xf32>
    %231 = arith.mulf %218, %230 : vector<8x128xf32>
    %c0_90 = arith.constant 0 : index
    %c0_91 = arith.constant 0 : index
    %232 = vector.load %arg5[%c0_90, %c0_91] : memref<248x128xf32, #tpu.memory_space<vmem>>, vector<1x128xf32>
    %c9_i32_92 = arith.constant 9 : i32
    %233 = tpu.dynamic_rotate %231 by %c9_i32_92 dim 1 : vector<8x128xf32>, i32 -> vector<8x128xf32>
    %234 = vector.broadcast %232 : vector<1x128xf32> to vector<8x128xf32>
    %235 = arith.mulf %233, %234 : vector<8x128xf32>
    %236 = arith.truncf %235 : vector<8x128xf32> to vector<8x128xbf16>
    %c1_93 = arith.constant 1 : index
    %c0_94 = arith.constant 0 : index
    %237 = vector.load %arg5[%c1_93, %c0_94] : memref<248x128xf32, #tpu.memory_space<vmem>>, vector<1x128xf32>
    %c8_i32_95 = arith.constant 8 : i32
    %238 = tpu.dynamic_rotate %231 by %c8_i32_95 dim 1 : vector<8x128xf32>, i32 -> vector<8x128xf32>
    %239 = vector.broadcast %237 : vector<1x128xf32> to vector<8x128xf32>
    %240 = arith.mulf %238, %239 : vector<8x128xf32>
    %241 = arith.truncf %240 : vector<8x128xf32> to vector<8x128xbf16>
    %c2_96 = arith.constant 2 : index
    %c0_97 = arith.constant 0 : index
    %242 = vector.load %arg5[%c2_96, %c0_97] : memref<248x128xf32, #tpu.memory_space<vmem>>, vector<1x128xf32>
    %c7_i32_98 = arith.constant 7 : i32
    %243 = tpu.dynamic_rotate %231 by %c7_i32_98 dim 1 : vector<8x128xf32>, i32 -> vector<8x128xf32>
    %244 = vector.broadcast %242 : vector<1x128xf32> to vector<8x128xf32>
    %245 = arith.mulf %243, %244 : vector<8x128xf32>
    %246 = arith.truncf %245 : vector<8x128xf32> to vector<8x128xbf16>
    %c3_99 = arith.constant 3 : index
    %c0_100 = arith.constant 0 : index
    %247 = vector.load %arg5[%c3_99, %c0_100] : memref<248x128xf32, #tpu.memory_space<vmem>>, vector<1x128xf32>
    %c1_i32_101 = arith.constant 1 : i32
    %248 = tpu.dynamic_rotate %231 by %c1_i32_101 dim 1 : vector<8x128xf32>, i32 -> vector<8x128xf32>
    %249 = vector.broadcast %247 : vector<1x128xf32> to vector<8x128xf32>
    %250 = arith.mulf %248, %249 : vector<8x128xf32>
    %251 = arith.truncf %250 : vector<8x128xf32> to vector<8x128xbf16>
    %252 = arith.truncf %231 : vector<8x128xf32> to vector<8x128xbf16>
    %c5_102 = arith.constant 5 : index
    %c0_103 = arith.constant 0 : index
    %253 = vector.load %arg5[%c5_102, %c0_103] : memref<248x128xf32, #tpu.memory_space<vmem>>, vector<1x128xf32>
    %c127_i32_104 = arith.constant 127 : i32
    %254 = tpu.dynamic_rotate %231 by %c127_i32_104 dim 1 : vector<8x128xf32>, i32 -> vector<8x128xf32>
    %255 = vector.broadcast %253 : vector<1x128xf32> to vector<8x128xf32>
    %256 = arith.mulf %254, %255 : vector<8x128xf32>
    %257 = arith.truncf %256 : vector<8x128xf32> to vector<8x128xbf16>
    %c6_105 = arith.constant 6 : index
    %c0_106 = arith.constant 0 : index
    %258 = vector.load %arg5[%c6_105, %c0_106] : memref<248x128xf32, #tpu.memory_space<vmem>>, vector<1x128xf32>
    %c121_i32_107 = arith.constant 121 : i32
    %259 = tpu.dynamic_rotate %231 by %c121_i32_107 dim 1 : vector<8x128xf32>, i32 -> vector<8x128xf32>
    %260 = vector.broadcast %258 : vector<1x128xf32> to vector<8x128xf32>
    %261 = arith.mulf %259, %260 : vector<8x128xf32>
    %262 = arith.truncf %261 : vector<8x128xf32> to vector<8x128xbf16>
    %c7_108 = arith.constant 7 : index
    %c0_109 = arith.constant 0 : index
    %263 = vector.load %arg5[%c7_108, %c0_109] : memref<248x128xf32, #tpu.memory_space<vmem>>, vector<1x128xf32>
    %c120_i32_110 = arith.constant 120 : i32
    %264 = tpu.dynamic_rotate %231 by %c120_i32_110 dim 1 : vector<8x128xf32>, i32 -> vector<8x128xf32>
    %265 = vector.broadcast %263 : vector<1x128xf32> to vector<8x128xf32>
    %266 = arith.mulf %264, %265 : vector<8x128xf32>
    %267 = arith.truncf %266 : vector<8x128xf32> to vector<8x128xbf16>
    %c8_111 = arith.constant 8 : index
    %c0_112 = arith.constant 0 : index
    %268 = vector.load %arg5[%c8_111, %c0_112] : memref<248x128xf32, #tpu.memory_space<vmem>>, vector<1x128xf32>
    %c119_i32_113 = arith.constant 119 : i32
    %269 = tpu.dynamic_rotate %231 by %c119_i32_113 dim 1 : vector<8x128xf32>, i32 -> vector<8x128xf32>
    %270 = vector.broadcast %268 : vector<1x128xf32> to vector<8x128xf32>
    %271 = arith.mulf %269, %270 : vector<8x128xf32>
    %272 = arith.truncf %271 : vector<8x128xf32> to vector<8x128xbf16>
    %273 = tpu.concatenate %236, %241, %246, %251, %252, %257, %262, %267, %272 in 0 : vector<8x128xbf16>, vector<8x128xbf16>, vector<8x128xbf16>, vector<8x128xbf16>, vector<8x128xbf16>, vector<8x128xbf16>, vector<8x128xbf16>, vector<8x128xbf16>, vector<8x128xbf16> -> vector<72x128xbf16>
    %c192_114 = arith.constant 192 : index
    %c0_115 = arith.constant 0 : index
    %274 = vector.load %arg4[%c192_114, %c0_115] : memref<256x144xbf16, #tpu.memory_space<vmem>>, vector<8x72xbf16>
    %cst_116 = arith.constant dense<0.000000e+00> : vector<8x128xf32>
    %275 = tpu.matmul %274, %273, %cst_116 {dimension_numbers = #tpu.dot_dimension_numbers<[1], [0], [0], [1], [0, 0, 1, 1], [], []>} : vector<8x72xbf16>, vector<72x128xbf16>, vector<8x128xf32> -> vector<8x128xf32>
    %c200 = arith.constant 200 : index
    %c0_117 = arith.constant 0 : index
    %276 = vector.load %arg5[%c200, %c0_117] : memref<248x128xf32, #tpu.memory_space<vmem>>, vector<8x128xf32>
    %277 = arith.addf %275, %276 : vector<8x128xf32>
    %278 = arith.mulf %277, %277 : vector<8x128xf32>
    %279 = arith.mulf %277, %278 : vector<8x128xf32>
    %cst_118 = arith.constant 4.471500e-02 : f32
    %280 = vector.broadcast %cst_118 : f32 to vector<8x128xf32>
    %281 = arith.mulf %280, %279 : vector<8x128xf32>
    %282 = arith.addf %277, %281 : vector<8x128xf32>
    %cst_119 = arith.constant 0.797884583 : f32
    %283 = vector.broadcast %cst_119 : f32 to vector<8x128xf32>
    %284 = arith.mulf %283, %282 : vector<8x128xf32>
    %285 = math.tanh %284 : vector<8x128xf32>
    %cst_120 = arith.constant 1.000000e+00 : f32
    %286 = vector.broadcast %cst_120 : f32 to vector<8x128xf32>
    %287 = arith.addf %286, %285 : vector<8x128xf32>
    %cst_121 = arith.constant 5.000000e-01 : f32
    %288 = vector.broadcast %cst_121 : f32 to vector<8x128xf32>
    %289 = arith.mulf %288, %287 : vector<8x128xf32>
    %290 = arith.mulf %277, %289 : vector<8x128xf32>
    %c0_122 = arith.constant 0 : index
    %c0_123 = arith.constant 0 : index
    %291 = vector.load %arg5[%c0_122, %c0_123] : memref<248x128xf32, #tpu.memory_space<vmem>>, vector<1x128xf32>
    %c9_i32_124 = arith.constant 9 : i32
    %292 = tpu.dynamic_rotate %290 by %c9_i32_124 dim 1 : vector<8x128xf32>, i32 -> vector<8x128xf32>
    %293 = vector.broadcast %291 : vector<1x128xf32> to vector<8x128xf32>
    %294 = arith.mulf %292, %293 : vector<8x128xf32>
    %295 = arith.truncf %294 : vector<8x128xf32> to vector<8x128xbf16>
    %c1_125 = arith.constant 1 : index
    %c0_126 = arith.constant 0 : index
    %296 = vector.load %arg5[%c1_125, %c0_126] : memref<248x128xf32, #tpu.memory_space<vmem>>, vector<1x128xf32>
    %c8_i32_127 = arith.constant 8 : i32
    %297 = tpu.dynamic_rotate %290 by %c8_i32_127 dim 1 : vector<8x128xf32>, i32 -> vector<8x128xf32>
    %298 = vector.broadcast %296 : vector<1x128xf32> to vector<8x128xf32>
    %299 = arith.mulf %297, %298 : vector<8x128xf32>
    %300 = arith.truncf %299 : vector<8x128xf32> to vector<8x128xbf16>
    %c2_128 = arith.constant 2 : index
    %c0_129 = arith.constant 0 : index
    %301 = vector.load %arg5[%c2_128, %c0_129] : memref<248x128xf32, #tpu.memory_space<vmem>>, vector<1x128xf32>
    %c7_i32_130 = arith.constant 7 : i32
    %302 = tpu.dynamic_rotate %290 by %c7_i32_130 dim 1 : vector<8x128xf32>, i32 -> vector<8x128xf32>
    %303 = vector.broadcast %301 : vector<1x128xf32> to vector<8x128xf32>
    %304 = arith.mulf %302, %303 : vector<8x128xf32>
    %305 = arith.truncf %304 : vector<8x128xf32> to vector<8x128xbf16>
    %c3_131 = arith.constant 3 : index
    %c0_132 = arith.constant 0 : index
    %306 = vector.load %arg5[%c3_131, %c0_132] : memref<248x128xf32, #tpu.memory_space<vmem>>, vector<1x128xf32>
    %c1_i32_133 = arith.constant 1 : i32
    %307 = tpu.dynamic_rotate %290 by %c1_i32_133 dim 1 : vector<8x128xf32>, i32 -> vector<8x128xf32>
    %308 = vector.broadcast %306 : vector<1x128xf32> to vector<8x128xf32>
    %309 = arith.mulf %307, %308 : vector<8x128xf32>
    %310 = arith.truncf %309 : vector<8x128xf32> to vector<8x128xbf16>
    %311 = arith.truncf %290 : vector<8x128xf32> to vector<8x128xbf16>
    %c5_134 = arith.constant 5 : index
    %c0_135 = arith.constant 0 : index
    %312 = vector.load %arg5[%c5_134, %c0_135] : memref<248x128xf32, #tpu.memory_space<vmem>>, vector<1x128xf32>
    %c127_i32_136 = arith.constant 127 : i32
    %313 = tpu.dynamic_rotate %290 by %c127_i32_136 dim 1 : vector<8x128xf32>, i32 -> vector<8x128xf32>
    %314 = vector.broadcast %312 : vector<1x128xf32> to vector<8x128xf32>
    %315 = arith.mulf %313, %314 : vector<8x128xf32>
    %316 = arith.truncf %315 : vector<8x128xf32> to vector<8x128xbf16>
    %c6_137 = arith.constant 6 : index
    %c0_138 = arith.constant 0 : index
    %317 = vector.load %arg5[%c6_137, %c0_138] : memref<248x128xf32, #tpu.memory_space<vmem>>, vector<1x128xf32>
    %c121_i32_139 = arith.constant 121 : i32
    %318 = tpu.dynamic_rotate %290 by %c121_i32_139 dim 1 : vector<8x128xf32>, i32 -> vector<8x128xf32>
    %319 = vector.broadcast %317 : vector<1x128xf32> to vector<8x128xf32>
    %320 = arith.mulf %318, %319 : vector<8x128xf32>
    %321 = arith.truncf %320 : vector<8x128xf32> to vector<8x128xbf16>
    %c7_140 = arith.constant 7 : index
    %c0_141 = arith.constant 0 : index
    %322 = vector.load %arg5[%c7_140, %c0_141] : memref<248x128xf32, #tpu.memory_space<vmem>>, vector<1x128xf32>
    %c120_i32_142 = arith.constant 120 : i32
    %323 = tpu.dynamic_rotate %290 by %c120_i32_142 dim 1 : vector<8x128xf32>, i32 -> vector<8x128xf32>
    %324 = vector.broadcast %322 : vector<1x128xf32> to vector<8x128xf32>
    %325 = arith.mulf %323, %324 : vector<8x128xf32>
    %326 = arith.truncf %325 : vector<8x128xf32> to vector<8x128xbf16>
    %c8_143 = arith.constant 8 : index
    %c0_144 = arith.constant 0 : index
    %327 = vector.load %arg5[%c8_143, %c0_144] : memref<248x128xf32, #tpu.memory_space<vmem>>, vector<1x128xf32>
    %c119_i32_145 = arith.constant 119 : i32
    %328 = tpu.dynamic_rotate %290 by %c119_i32_145 dim 1 : vector<8x128xf32>, i32 -> vector<8x128xf32>
    %329 = vector.broadcast %327 : vector<1x128xf32> to vector<8x128xf32>
    %330 = arith.mulf %328, %329 : vector<8x128xf32>
    %331 = arith.truncf %330 : vector<8x128xf32> to vector<8x128xbf16>
    %332 = tpu.concatenate %295, %300, %305, %310, %311, %316, %321, %326, %331 in 0 : vector<8x128xbf16>, vector<8x128xbf16>, vector<8x128xbf16>, vector<8x128xbf16>, vector<8x128xbf16>, vector<8x128xbf16>, vector<8x128xbf16>, vector<8x128xbf16>, vector<8x128xbf16> -> vector<72x128xbf16>
    %c208 = arith.constant 208 : index
    %c0_146 = arith.constant 0 : index
    %333 = vector.load %arg4[%c208, %c0_146] : memref<256x144xbf16, #tpu.memory_space<vmem>>, vector<8x72xbf16>
    %cst_147 = arith.constant dense<0.000000e+00> : vector<8x128xf32>
    %334 = tpu.matmul %333, %332, %cst_147 {dimension_numbers = #tpu.dot_dimension_numbers<[1], [0], [0], [1], [0, 0, 1, 1], [], []>} : vector<8x72xbf16>, vector<72x128xbf16>, vector<8x128xf32> -> vector<8x128xf32>
    %c208_148 = arith.constant 208 : index
    %c0_149 = arith.constant 0 : index
    %335 = vector.load %arg5[%c208_148, %c0_149] : memref<248x128xf32, #tpu.memory_space<vmem>>, vector<8x128xf32>
    %336 = arith.addf %334, %335 : vector<8x128xf32>
    %337 = arith.truncf %336 : vector<8x128xf32> to vector<8x128xbf16>
    %338 = arith.mulf %337, %337 : vector<8x128xbf16>
    %339 = arith.mulf %337, %338 : vector<8x128xbf16>
    %cst_150 = arith.constant 4.467770e-02 : bf16
    %340 = vector.broadcast %cst_150 : bf16 to vector<8x128xbf16>
    %341 = arith.mulf %340, %339 : vector<8x128xbf16>
    %342 = arith.addf %337, %341 : vector<8x128xbf16>
    %cst_151 = arith.constant 7.968750e-01 : bf16
    %343 = vector.broadcast %cst_151 : bf16 to vector<8x128xbf16>
    %344 = arith.mulf %343, %342 : vector<8x128xbf16>
    %345 = math.tanh %344 : vector<8x128xbf16>
    %cst_152 = arith.constant 1.000000e+00 : bf16
    %346 = vector.broadcast %cst_152 : bf16 to vector<8x128xbf16>
    %347 = arith.addf %346, %345 : vector<8x128xbf16>
    %cst_153 = arith.constant 5.000000e-01 : bf16
    %348 = vector.broadcast %cst_153 : bf16 to vector<8x128xbf16>
    %349 = arith.mulf %348, %347 : vector<8x128xbf16>
    %350 = arith.mulf %337, %349 : vector<8x128xbf16>
    %c224 = arith.constant 224 : index
    %c0_154 = arith.constant 0 : index
    %351 = vector.load %arg4[%c224, %c0_154] : memref<256x144xbf16, #tpu.memory_space<vmem>>, vector<32x8xbf16>
    %cst_155 = arith.constant dense<0.000000e+00> : vector<32x128xf32>
    %352 = tpu.matmul %351, %350, %cst_155 {dimension_numbers = #tpu.dot_dimension_numbers<[1], [0], [0], [1], [0, 0, 1, 1], [], []>} : vector<32x8xbf16>, vector<8x128xbf16>, vector<32x128xf32> -> vector<32x128xf32>
    %c216 = arith.constant 216 : index
    %c0_156 = arith.constant 0 : index
    %353 = vector.load %arg5[%c216, %c0_156] : memref<248x128xf32, #tpu.memory_space<vmem>>, vector<32x128xf32>
    %354 = arith.addf %352, %353 : vector<32x128xf32>
    %355 = arith.addf %354, %200 : vector<32x128xf32>
    %c0_157 = arith.constant 0 : index
    %c0_158 = arith.constant 0 : index
    %356 = vector.load %arg6[%c0_157, %c0_158] : memref<32x128xf32, #tpu.memory_space<vmem>>, vector<32x128xf32>
    tpu.vector_store %arg6[%c0_157, %c0_158], %355 {strides = array<i32>} : memref<32x128xf32, #tpu.memory_space<vmem>>, vector<32x128xf32>,
    %c0_159 = arith.constant 0 : index
    %c0_160 = arith.constant 0 : index
    %357 = vector.load %arg7[%c0_159, %c0_160] : memref<16x128xf32, #tpu.memory_space<vmem>>, vector<16x128xf32>
    tpu.vector_store %arg7[%c0_159, %c0_160], %191 {strides = array<i32>} : memref<16x128xf32, #tpu.memory_space<vmem>>, vector<16x128xf32>,
    return
  }
  func.func @transform_0(%arg0: i32) -> (i32, i32) {
    %c0_i32 = arith.constant 0 : i32
    %c0_i32_0 = arith.constant 0 : i32
    return %c0_i32, %arg0 : i32, i32
  }
  func.func @transform_1(%arg0: i32) -> (i32, i32) {
    %c0_i32 = arith.constant 0 : i32
    %c0_i32_0 = arith.constant 0 : i32
    return %c0_i32, %arg0 : i32, i32
  }
  func.func @transform_2(%arg0: i32) -> (i32, i32) {
    %c0_i32 = arith.constant 0 : i32
    %c0_i32_0 = arith.constant 0 : i32
    return %c0_i32, %arg0 : i32, i32
  }
  func.func @transform_3(%arg0: i32) -> (i32, i32) {
    %c0_i32 = arith.constant 0 : i32
    %c0_i32_0 = arith.constant 0 : i32
    %c0_i32_1 = arith.constant 0 : i32
    return %c0_i32, %c0_i32_0 : i32, i32
  }
  func.func @transform_4(%arg0: i32) -> (i32, i32) {
    %c0_i32 = arith.constant 0 : i32
    %c0_i32_0 = arith.constant 0 : i32
    %c0_i32_1 = arith.constant 0 : i32
    return %c0_i32, %c0_i32_0 : i32, i32
  }
  func.func @transform_5(%arg0: i32) -> (i32, i32) {
    %c0_i32 = arith.constant 0 : i32
    %c0_i32_0 = arith.constant 0 : i32
    return %c0_i32, %arg0 : i32, i32
  }
  func.func @transform_6(%arg0: i32) -> (i32, i32) {
    %c0_i32 = arith.constant 0 : i32
    %c0_i32_0 = arith.constant 0 : i32
    return %c0_i32, %arg0 : i32, i32
  }
}

</mosaic_0001>

<llo_original>
// kernel: decoder_block_forward.1
$region0: #{decoder_block_forward.1}
  #allocation0 [shape = 'u32[]', space=smem, size = 0x4, offset = 0x4, fixed_abs, tag = 'smem constant byte address 0x4 - core index']
  #allocation1 [shape = 'u32[72,128]{1,0:T(1,128)}', space=vmem, size = 0x9000, scoped, tag = 'internal scratch']
  %s0 = inlined_call_operand.vmem [shape: f32[32,256], index: 0, kind: input, shape index: {}]
  %s1 = inlined_call_operand.vmem [shape: f32[32,256], index: 1, kind: input, shape index: {}]
  %s2 = inlined_call_operand.hbm [shape: f32[16,256], index: 2, kind: input, shape index: {}]
  %s3 = inlined_call_operand.vmem [shape: bf16[256,144], index: 3, kind: input, shape index: {}]
  %s4 = inlined_call_operand.vmem [shape: f32[248,128], index: 4, kind: input, shape index: {}]
  %s5 = inlined_call_operand.hbm [shape: f32[32,256], index: 5, kind: output, shape index: {0}]
  %s6 = inlined_call_operand.hbm [shape: f32[16,256], index: 6, kind: output, shape index: {1}]
  %7 = xla_tuple %s5, %s6
  %s8 = sld [smem:[#allocation0]]
  $region141: #{decoder_block_forward.1} parent=0
    _
  %s10 = ssub.s32 1, %s8
  %s11 = scalar_select 0, %s10, %s8
  $region1: #{decoder_block_forward.1} parent=0
    #allocation2 [shape = 'u8[32768]{0}', space=vmem, size = 0x8000, scoped, tag = 'input window, operand 0']
    #allocation3 [shape = 'u8[32768]{0}', space=vmem, size = 0x8000, scoped, tag = 'input window, operand 1']
    #allocation4 [shape = 'u8[16384]{0}', space=vmem, size = 0x4000, scoped, tag = 'input window, operand 2']
    #allocation5 [shape = 's32[2]{0}', space=sflag, size = 0x8, scoped, tag = 'scoped memory for decoder_block_forward.1']
    #allocation6 [shape = 's32[2]{0}', space=sflag, size = 0x8, scoped, tag = 'scoped memory for decoder_block_forward.1']
    #allocation7 [shape = 'u8[32768]{0}', space=vmem, size = 0x8000, scoped, tag = 'output window, operand 0']
    #allocation8 [shape = 'u8[16384]{0}', space=vmem, size = 0x4000, scoped, tag = 'output window, operand 1']
    #allocation9 [shape = 's32[2]{0}', space=sflag, size = 0x8, scoped, tag = 'scoped memory for decoder_block_forward.1']
    %12 = vsyncpa [#allocation5], 0
    %s13 = scalar_lea.sflag [#allocation5], 1
    %14 = vsyncpa %s13, 0
    %15 = vsyncpa [#allocation6], 0
    %s16 = scalar_lea.sflag [#allocation6], 1
    %17 = vsyncpa %s16, 0
    %18 = vsyncpa [#allocation9], 0
    %s19 = scalar_lea.sflag [#allocation9], 1
    %20 = vsyncpa %s19, 0
    loop: start=0, step=1, limit=4
    $region2: #{decoder_block_forward.1} parent=1 // loop_pre_header
      _
    $region3: #{decoder_block_forward.1} parent=1 // loop_header
      %s22 = sphi 0, %s26
      %p23 = scmp.ge.s32.totalorder %s22, 4
      %s32 = sphi 0, %s34
      %s35 = sphi 0, %s32
      %s36 = sphi 0, %s35
      %s52 = sphi 0, %s36
      %s58 = sphi 0, %s60
      %s61 = sphi 0, %s58
      %s62 = sphi 0, %s61
      %s78 = sphi 0, %s62
      %s84 = sphi 0, %s86
      %s87 = sphi 0, %s84
      %s88 = sphi 0, %s87
      %s104 = sphi 0, %s88
      %s108 = sphi 0, %s108
      %s110 = sphi 0, %s108
      %s111 = sphi 0, %s110
      %s125 = sphi 0, %s111
      %s129 = sphi 0, %s129
      %s131 = sphi 0, %s129
      %s132 = sphi 0, %s131
      %s146 = sphi 0, %s132
      %s152 = sphi 0, %s154
      %s155 = sphi 0, %s152
      %s156 = sphi 0, %s155
      %s172 = sphi 0, %s156
      %s178 = sphi 0, %s180
      %s181 = sphi 0, %s178
      %s182 = sphi 0, %s181
      %s198 = sphi 0, %s182
    $region4: #{decoder_block_forward.1} parent=1 // loop_header_branch
      %25 = sbr.rel (%p23) target = $region8
    $region5: #{decoder_block_forward.1} parent=1 // loop_body
      %s27 = ssub.s32 %s22, 1
      %s28 = ssub.s32 %s22, 2
      %s29 = sadd.s32 %s22, 1
      %s30 = ssub.s32 %s22, %s29
      %p31 = scmp.eq.s32.totalorder %s30, 0
      %s33 = sadd.s32 %s32, 1
      %s34 = scalar_select %p31, %s32, %s33
      %p37 = pneg %p31
      %p38 = scmp.eq.s32.totalorder %s22, 1
      %p39 = por %p37, %p38
      %p40 = scmp.ne.s32.totalorder %s32, %s35
      %p41 = scmp.eq.s32.totalorder %s22, 0
      %p42 = por %p40, %p41
      %p43 = scmp.ne.s32.totalorder %s32, %s35
      %p44 = scmp.eq.s32.totalorder %s27, 1
      %p45 = por %p43, %p44
      %p46 = scmp.ne.s32.totalorder %s35, %s36
      %p47 = scmp.eq.s32.totalorder %s27, 0
      %p48 = por %p46, %p47
      %p49 = scmp.ne.s32.totalorder %s35, %s36
      %p50 = scmp.eq.s32.totalorder %s28, 1
      %p51 = por %p49, %p50
      %p53 = scmp.ne.s32.totalorder %s36, %s52
      %p54 = scmp.eq.s32.totalorder %s28, 0
      %p55 = por %p53, %p54
      %s56 = ssub.s32 %s22, %s29
      %p57 = scmp.eq.s32.totalorder %s56, 0
      %s59 = sadd.s32 %s58, 1
      %s60 = scalar_select %p57, %s58, %s59
      %p63 = pneg %p57
      %p64 = scmp.eq.s32.totalorder %s22, 1
      %p65 = por %p63, %p64
      %p66 = scmp.ne.s32.totalorder %s58, %s61
      %p67 = scmp.eq.s32.totalorder %s22, 0
      %p68 = por %p66, %p67
      %p69 = scmp.ne.s32.totalorder %s58, %s61
      %p70 = scmp.eq.s32.totalorder %s27, 1
      %p71 = por %p69, %p70
      %p72 = scmp.ne.s32.totalorder %s61, %s62
      %p73 = scmp.eq.s32.totalorder %s27, 0
      %p74 = por %p72, %p73
      %p75 = scmp.ne.s32.totalorder %s61, %s62
      %p76 = scmp.eq.s32.totalorder %s28, 1
      %p77 = por %p75, %p76
      %p79 = scmp.ne.s32.totalorder %s62, %s78
      %p80 = scmp.eq.s32.totalorder %s28, 0
      %p81 = por %p79, %p80
      %s82 = ssub.s32 %s22, %s29
      %p83 = scmp.eq.s32.totalorder %s82, 0
      %s85 = sadd.s32 %s84, 1
      %s86 = scalar_select %p83, %s84, %s85
      %p89 = pneg %p83
      %p90 = scmp.eq.s32.totalorder %s22, 1
      %p91 = por %p89, %p90
      %p92 = scmp.ne.s32.totalorder %s84, %s87
      %p93 = scmp.eq.s32.totalorder %s22, 0
      %p94 = por %p92, %p93
      %p95 = scmp.ne.s32.totalorder %s84, %s87
      %p96 = scmp.eq.s32.totalorder %s27, 1
      %p97 = por %p95, %p96
      %p98 = scmp.ne.s32.totalorder %s87, %s88
      %p99 = scmp.eq.s32.totalorder %s27, 0
      %p100 = por %p98, %p99
      %p101 = scmp.ne.s32.totalorder %s87, %s88
      %p102 = scmp.eq.s32.totalorder %s28, 1
      %p103 = por %p101, %p102
      %p105 = scmp.ne.s32.totalorder %s88, %s104
      %p106 = scmp.eq.s32.totalorder %s28, 0
      %p107 = por %p105, %p106
      %s109 = sadd.s32 %s108, 1
      %p112 = scmp.eq.s32.totalorder %s22, 1
      %p113 = scmp.ne.s32.totalorder %s108, %s110
      %p114 = scmp.eq.s32.totalorder %s22, 0
      %p115 = por %p113, %p114
      %p116 = scmp.ne.s32.totalorder %s108, %s110
      %p117 = scmp.eq.s32.totalorder %s27, 1
      %p118 = por %p116, %p117
      %p119 = scmp.ne.s32.totalorder %s110, %s111
      %p120 = scmp.eq.s32.totalorder %s27, 0
      %p121 = por %p119, %p120
      %p122 = scmp.ne.s32.totalorder %s110, %s111
      %p123 = scmp.eq.s32.totalorder %s28, 1
      %p124 = por %p122, %p123
      %p126 = scmp.ne.s32.totalorder %s111, %s125
      %p127 = scmp.eq.s32.totalorder %s28, 0
      %p128 = por %p126, %p127
      %s130 = sadd.s32 %s129, 1
      %p133 = scmp.eq.s32.totalorder %s22, 1
      %p134 = scmp.ne.s32.totalorder %s129, %s131
      %p135 = scmp.eq.s32.totalorder %s22, 0
      %p136 = por %p134, %p135
      %p137 = scmp.ne.s32.totalorder %s129, %s131
      %p138 = scmp.eq.s32.totalorder %s27, 1
      %p139 = por %p137, %p138
      %p140 = scmp.ne.s32.totalorder %s131, %s132
      %p141 = scmp.eq.s32.totalorder %s27, 0
      %p142 = por %p140, %p141
      %p143 = scmp.ne.s32.totalorder %s131, %s132
      %p144 = scmp.eq.s32.totalorder %s28, 1
      %p145 = por %p143, %p144
      %p147 = scmp.ne.s32.totalorder %s132, %s146
      %p148 = scmp.eq.s32.totalorder %s28, 0
      %p149 = por %p147, %p148
      %s150 = ssub.s32 %s22, %s29
      %p151 = scmp.eq.s32.totalorder %s150, 0
      %s153 = sadd.s32 %s152, 1
      %s154 = scalar_select %p151, %s152, %s153
      %p157 = pneg %p151
      %p158 = scmp.eq.s32.totalorder %s22, 1
      %p159 = por %p157, %p158
      %p160 = scmp.ne.s32.totalorder %s152, %s155
      %p161 = scmp.eq.s32.totalorder %s22, 0
      %p162 = por %p160, %p161
      %p163 = scmp.ne.s32.totalorder %s152, %s155
      %p164 = scmp.eq.s32.totalorder %s27, 1
      %p165 = por %p163, %p164
      %p166 = scmp.ne.s32.totalorder %s155, %s156
      %p167 = scmp.eq.s32.totalorder %s27, 0
      %p168 = por %p166, %p167
      %p169 = scmp.ne.s32.totalorder %s155, %s156
      %p170 = scmp.eq.s32.totalorder %s28, 1
      %p171 = por %p169, %p170
      %p173 = scmp.ne.s32.totalorder %s156, %s172
      %p174 = scmp.eq.s32.totalorder %s28, 0
      %p175 = por %p173, %p174
      %s176 = ssub.s32 %s22, %s29
      %p177 = scmp.eq.s32.totalorder %s176, 0
      %s179 = sadd.s32 %s178, 1
      %s180 = scalar_select %p177, %s178, %s179
      %p183 = pneg %p177
      %p184 = scmp.eq.s32.totalorder %s22, 1
      %p185 = por %p183, %p184
      %p186 = scmp.ne.s32.totalorder %s178, %s181
      %p187 = scmp.eq.s32.totalorder %s22, 0
      %p188 = por %p186, %p187
      %p189 = scmp.ne.s32.totalorder %s178, %s181
      %p190 = scmp.eq.s32.totalorder %s27, 1
      %p191 = por %p189, %p190
      %p192 = scmp.ne.s32.totalorder %s181, %s182
      %p193 = scmp.eq.s32.totalorder %s27, 0
      %p194 = por %p192, %p193
      %p195 = scmp.ne.s32.totalorder %s181, %s182
      %p196 = scmp.eq.s32.totalorder %s28, 1
      %p197 = por %p195, %p196
      %p199 = scmp.ne.s32.totalorder %s182, %s198
      %p200 = scmp.eq.s32.totalorder %s28, 0
      %p201 = por %p199, %p200
      %p202 = scmp.le.s32.totalorder 1, %s22
      %p203 = scmp.lt.s32.totalorder %s22, 3
      %p204 = pnand %p202, %p203
      %p205 = pneg %p204
      // Predicated region
      $region9: #{decoder_block_forward.1} parent=5 // pred_check
        _
      $region10: #{decoder_block_forward.1} parent=5 // pred_check_branch
        %207 = sbr.rel (%p204) target = $region12
      $region11: #{decoder_block_forward.1} parent=5 // pred_region
        %s208 = ssub.s32 %s22, 1
        // Predicated region
        $region13: #{decoder_block_forward.1} parent=11 // pred_check
          %p209 = pneg %p121
        $region14: #{decoder_block_forward.1} parent=11 // pred_check_branch
          %211 = sbr.rel (%p209) target = $region16
        $region15: #{decoder_block_forward.1} parent=11 // pred_region
          _
        $region16: #{decoder_block_forward.1} parent=11 // pred_fallthru
          _
        // Predicated region
        $region17: #{decoder_block_forward.1} parent=11 // pred_check
          %p212 = pneg %p142
        $region18: #{decoder_block_forward.1} parent=11 // pred_check_branch
          %214 = sbr.rel (%p212) target = $region20
        $region19: #{decoder_block_forward.1} parent=11 // pred_region
          _
        $region20: #{decoder_block_forward.1} parent=11 // pred_fallthru
          _
      $region12: #{decoder_block_forward.1} parent=5 // pred_fallthru
        _
      %p215 = scmp.lt.s32.totalorder %s22, 2
      // Predicated region
      $region21: #{decoder_block_forward.1} parent=5 // pred_check
        %p216 = pneg %p215
      $region22: #{decoder_block_forward.1} parent=5 // pred_check_branch
        %218 = sbr.rel (%p216) target = $region24
      $region23: #{decoder_block_forward.1} parent=5 // pred_region
        // Predicated region
        $region25: #{decoder_block_forward.1} parent=23 // pred_check
          %p219 = pneg %p42
        $region26: #{decoder_block_forward.1} parent=23 // pred_check_branch
          %221 = sbr.rel (%p219) target = $region28
        $region27: #{decoder_block_forward.1} parent=23 // pred_region
          %s222 = sand.u32 %s32, 1
          %s223 = sand.u32 %s32, 1
          %s224 = smul.addr %s223, 32
          %s225 = scalar_lea.vmem [#allocation2], %s224
          %s226 = smul.addr %s22, 8
          %s227 = scalar_lea.vmem %s0, %s226
          // Predicated region
          $region29: #{decoder_block_forward.1} parent=27 // pred_check
            _
          $region30: #{decoder_block_forward.1} parent=27 // pred_check_branch
            %229 = sbr.rel (0) target = $region32
          $region31: #{decoder_block_forward.1} parent=27 // pred_region
            // Predicated region
            $region33: #{decoder_block_forward.1} parent=31 // pred_check
              _
            $region34: #{decoder_block_forward.1} parent=31 // pred_check_branch
              %231 = sbr.rel (0) target = $region36
            $region35: #{decoder_block_forward.1} parent=31 // pred_region
              // Predicated region
              $region48: #{decoder_block_forward.1} parent=35 // pred_check
                _
              $region49: #{decoder_block_forward.1} parent=35 // pred_check_branch
                %253 = sbr.rel (0) target = $region51
              $region50: #{decoder_block_forward.1} parent=35 // pred_region
                loop: start=0, step=1, limit=1
                $region52: #{decoder_block_forward.1} parent=50 // loop_pre_header
                  _
                $region53: #{decoder_block_forward.1} parent=50 // loop_header
                  %s255 = sphi 0, %s259
                  %p256 = scmp.ge.s32.totalorder %s255, 1
                  %s260 = sphi %s227, %s227
                  %s261 = sphi %s225, %s225
                $region54: #{decoder_block_forward.1} parent=50 // loop_header_branch
                  %258 = sbr.rel (%p256) target = $region58
                $region55: #{decoder_block_forward.1} parent=50 // loop_body
                  %v262 = vld [vmem:[%s260] sm:$0xff]
                  %263 = vst [vmem:[%s261] sm:$0xff] %v262
                  %v264 = vld [vmem:[%s260 + $0x10] sm:$0xff]
                  %265 = vst [vmem:[%s261 + $0x8] sm:$0xff] %v264
                  %v266 = vld [vmem:[%s260 + $0x20] sm:$0xff]
                  %267 = vst [vmem:[%s261 + $0x10] sm:$0xff] %v266
                  %v268 = vld [vmem:[%s260 + $0x30] sm:$0xff]
                  %269 = vst [vmem:[%s261 + $0x18] sm:$0xff] %v268
                $region56: #{decoder_block_forward.1} parent=50 // loop_footer
                  %s259 = sadd.s32 1, %s255
                $region57: #{decoder_block_forward.1} parent=50 // loop_footer_branch
                  %254 = sbr.rel target = $region53
                $region58: #{decoder_block_forward.1} parent=50 // loop_exit
                  _
              $region51: #{decoder_block_forward.1} parent=35 // pred_fallthru
                _
              // Predicated region
              $region59: #{decoder_block_forward.1} parent=35 // pred_check
                _
              $region60: #{decoder_block_forward.1} parent=35 // pred_check_branch
                %271 = sbr.rel target = $region62
              $region61: #{decoder_block_forward.1} parent=35 // pred_region
                _
              $region62: #{decoder_block_forward.1} parent=35 // pred_fallthru
                _
            $region36: #{decoder_block_forward.1} parent=31 // pred_fallthru
              _
            // Predicated region
            $region37: #{decoder_block_forward.1} parent=31 // pred_check
              _
            $region38: #{decoder_block_forward.1} parent=31 // pred_check_branch
              %233 = sbr.rel target = $region40
            $region39: #{decoder_block_forward.1} parent=31 // pred_region
              %s235 = ssub.s32 256, 1
              loop: start=0, step=1, limit=1
              $region41: #{decoder_block_forward.1} parent=39 // loop_pre_header
                _
              $region42: #{decoder_block_forward.1} parent=39 // loop_header
                %s237 = sphi 0, %s241
                %p238 = scmp.ge.s32.totalorder %s237, 1
                %s242 = sphi %s227, %s227
                %s243 = sphi %s225, %s225
              $region43: #{decoder_block_forward.1} parent=39 // loop_header_branch
                %240 = sbr.rel (%p238) target = $region47
              $region44: #{decoder_block_forward.1} parent=39 // loop_body
                %v244 = vld [vmem:[%s242] sm:%s235]
                %245 = vst [vmem:[%s243] sm:%s235] %v244
                %v246 = vld [vmem:[%s242 + $0x10] sm:%s235]
                %247 = vst [vmem:[%s243 + $0x8] sm:%s235] %v246
                %v248 = vld [vmem:[%s242 + $0x20] sm:%s235]
                %249 = vst [vmem:[%s243 + $0x10] sm:%s235] %v248
                %v250 = vld [vmem:[%s242 + $0x30] sm:%s235]
                %251 = vst [vmem:[%s243 + $0x18] sm:%s235] %v250
              $region45: #{decoder_block_forward.1} parent=39 // loop_footer
                %s241 = sadd.s32 1, %s237
              $region46: #{decoder_block_forward.1} parent=39 // loop_footer_branch
                %236 = sbr.rel target = $region42
              $region47: #{decoder_block_forward.1} parent=39 // loop_exit
                _
            $region40: #{decoder_block_forward.1} parent=31 // pred_fallthru
              _
          $region32: #{decoder_block_forward.1} parent=27 // pred_fallthru
            _
          %272 = vnop
        $region28: #{decoder_block_forward.1} parent=23 // pred_fallthru
          _
        // Predicated region
        $region63: #{decoder_block_forward.1} parent=23 // pred_check
          %p273 = pneg %p68
        $region64: #{decoder_block_forward.1} parent=23 // pred_check_branch
          %275 = sbr.rel (%p273) target = $region66
        $region65: #{decoder_block_forward.1} parent=23 // pred_region
          %s276 = sand.u32 %s58, 1
          %s277 = sand.u32 %s58, 1
          %s278 = smul.addr %s277, 32
          %s279 = scalar_lea.vmem [#allocation3], %s278
          %s280 = smul.addr %s22, 8
          %s281 = scalar_lea.vmem %s1, %s280
          // Predicated region
          $region67: #{decoder_block_forward.1} parent=65 // pred_check
            _
          $region68: #{decoder_block_forward.1} parent=65 // pred_check_branch
            %283 = sbr.rel (0) target = $region70
          $region69: #{decoder_block_forward.1} parent=65 // pred_region
            // Predicated region
            $region71: #{decoder_block_forward.1} parent=69 // pred_check
              _
            $region72: #{decoder_block_forward.1} parent=69 // pred_check_branch
              %285 = sbr.rel (0) target = $region74
            $region73: #{decoder_block_forward.1} parent=69 // pred_region
              // Predicated region
              $region86: #{decoder_block_forward.1} parent=73 // pred_check
                _
              $region87: #{decoder_block_forward.1} parent=73 // pred_check_branch
                %307 = sbr.rel (0) target = $region89
              $region88: #{decoder_block_forward.1} parent=73 // pred_region
                loop: start=0, step=1, limit=1
                $region90: #{decoder_block_forward.1} parent=88 // loop_pre_header
                  _
                $region91: #{decoder_block_forward.1} parent=88 // loop_header
                  %s309 = sphi 0, %s313
                  %p310 = scmp.ge.s32.totalorder %s309, 1
                  %s314 = sphi %s281, %s281
                  %s315 = sphi %s279, %s279
                $region92: #{decoder_block_forward.1} parent=88 // loop_header_branch
                  %312 = sbr.rel (%p310) target = $region96
                $region93: #{decoder_block_forward.1} parent=88 // loop_body
                  %v316 = vld [vmem:[%s314] sm:$0xff]
                  %317 = vst [vmem:[%s315] sm:$0xff] %v316
                  %v318 = vld [vmem:[%s314 + $0x10] sm:$0xff]
                  %319 = vst [vmem:[%s315 + $0x8] sm:$0xff] %v318
                  %v320 = vld [vmem:[%s314 + $0x20] sm:$0xff]
                  %321 = vst [vmem:[%s315 + $0x10] sm:$0xff] %v320
                  %v322 = vld [vmem:[%s314 + $0x30] sm:$0xff]
                  %323 = vst [vmem:[%s315 + $0x18] sm:$0xff] %v322
                $region94: #{decoder_block_forward.1} parent=88 // loop_footer
                  %s313 = sadd.s32 1, %s309
                $region95: #{decoder_block_forward.1} parent=88 // loop_footer_branch
                  %308 = sbr.rel target = $region91
                $region96: #{decoder_block_forward.1} parent=88 // loop_exit
                  _
              $region89: #{decoder_block_forward.1} parent=73 // pred_fallthru
                _
              // Predicated region
              $region97: #{decoder_block_forward.1} parent=73 // pred_check
                _
              $region98: #{decoder_block_forward.1} parent=73 // pred_check_branch
                %325 = sbr.rel target = $region100
              $region99: #{decoder_block_forward.1} parent=73 // pred_region
                _
              $region100: #{decoder_block_forward.1} parent=73 // pred_fallthru
                _
            $region74: #{decoder_block_forward.1} parent=69 // pred_fallthru
              _
            // Predicated region
            $region75: #{decoder_block_forward.1} parent=69 // pred_check
              _
            $region76: #{decoder_block_forward.1} parent=69 // pred_check_branch
              %287 = sbr.rel target = $region78
            $region77: #{decoder_block_forward.1} parent=69 // pred_region
              %s289 = ssub.s32 256, 1
              loop: start=0, step=1, limit=1
              $region79: #{decoder_block_forward.1} parent=77 // loop_pre_header
                _
              $region80: #{decoder_block_forward.1} parent=77 // loop_header
                %s291 = sphi 0, %s295
                %p292 = scmp.ge.s32.totalorder %s291, 1
                %s296 = sphi %s281, %s281
                %s297 = sphi %s279, %s279
              $region81: #{decoder_block_forward.1} parent=77 // loop_header_branch
                %294 = sbr.rel (%p292) target = $region85
              $region82: #{decoder_block_forward.1} parent=77 // loop_body
                %v298 = vld [vmem:[%s296] sm:%s289]
                %299 = vst [vmem:[%s297] sm:%s289] %v298
                %v300 = vld [vmem:[%s296 + $0x10] sm:%s289]
                %301 = vst [vmem:[%s297 + $0x8] sm:%s289] %v300
                %v302 = vld [vmem:[%s296 + $0x20] sm:%s289]
                %303 = vst [vmem:[%s297 + $0x10] sm:%s289] %v302
                %v304 = vld [vmem:[%s296 + $0x30] sm:%s289]
                %305 = vst [vmem:[%s297 + $0x18] sm:%s289] %v304
              $region83: #{decoder_block_forward.1} parent=77 // loop_footer
                %s295 = sadd.s32 1, %s291
              $region84: #{decoder_block_forward.1} parent=77 // loop_footer_branch
                %290 = sbr.rel target = $region80
              $region85: #{decoder_block_forward.1} parent=77 // loop_exit
                _
            $region78: #{decoder_block_forward.1} parent=69 // pred_fallthru
              _
          $region70: #{decoder_block_forward.1} parent=65 // pred_fallthru
            _
          %326 = vnop
        $region66: #{decoder_block_forward.1} parent=23 // pred_fallthru
          _
        // Predicated region
        $region101: #{decoder_block_forward.1} parent=23 // pred_check
          %p327 = pneg %p94
        $region102: #{decoder_block_forward.1} parent=23 // pred_check_branch
          %329 = sbr.rel (%p327) target = $region104
        $region103: #{decoder_block_forward.1} parent=23 // pred_region
          %s330 = sand.u32 %s84, 1
          %s331 = scalar_lea.sflag [#allocation5], %s330
          %s332 = sand.u32 %s84, 1
          %s333 = smul.addr %s332, 16
          %s334 = scalar_lea.vmem [#allocation4], %s333
          %336 = vsyncadd %s331, 0
          %s337 = smul.addr %s22, 8
          %s338 = scalar_lea.hbm %s2, %s337
          %s339 = sshll.u32 %s338, 4
          %s340 = int_to_ptr.hbm [resolvable:$true] %s339
          %s341 = sshll.u32 %s334, 4
          %s342 = int_to_ptr.vmem [resolvable:$true] %s341
          %347 = dma.hbm_to_vmem [thread:$0]  %s340, 256, %s342, %s331, 256, 128, 8
        $region104: #{decoder_block_forward.1} parent=23 // pred_fallthru
          _
      $region24: #{decoder_block_forward.1} parent=5 // pred_fallthru
        _
      %p348 = scmp.le.s32.totalorder 1, %s22
      %p349 = scmp.lt.s32.totalorder %s22, 3
      %p350 = pnand %p348, %p349
      %p351 = pneg %p350
      // Predicated region
      $region105: #{decoder_block_forward.1} parent=5 // pred_check
        _
      $region106: #{decoder_block_forward.1} parent=5 // pred_check_branch
        %353 = sbr.rel (%p350) target = $region108
      $region107: #{decoder_block_forward.1} parent=5 // pred_region
        %s354 = ssub.s32 %s22, 1
        %s355 = sand.u32 %s35, 1
        %s356 = sand.u32 %s35, 1
        %s357 = smul.addr %s356, 32
        %s358 = scalar_lea.vmem [#allocation2], %s357
        // Predicated region
        $region109: #{decoder_block_forward.1} parent=107 // pred_check
          %p359 = pneg %p48
        $region110: #{decoder_block_forward.1} parent=107 // pred_check_branch
          %361 = sbr.rel (%p359) target = $region112
        $region111: #{decoder_block_forward.1} parent=107 // pred_region
          _
        $region112: #{decoder_block_forward.1} parent=107 // pred_fallthru
          _
        %s362 = sand.u32 %s61, 1
        %s363 = sand.u32 %s61, 1
        %s364 = smul.addr %s363, 32
        %s365 = scalar_lea.vmem [#allocation3], %s364
        // Predicated region
        $region113: #{decoder_block_forward.1} parent=107 // pred_check
          %p366 = pneg %p74
        $region114: #{decoder_block_forward.1} parent=107 // pred_check_branch
          %368 = sbr.rel (%p366) target = $region116
        $region115: #{decoder_block_forward.1} parent=107 // pred_region
          _
        $region116: #{decoder_block_forward.1} parent=107 // pred_fallthru
          _
        %s369 = sand.u32 %s87, 1
        %s370 = scalar_lea.sflag [#allocation5], %s369
        %s371 = sand.u32 %s87, 1
        %s372 = smul.addr %s371, 16
        %s373 = scalar_lea.vmem [#allocation4], %s372
        // Predicated region
        $region117: #{decoder_block_forward.1} parent=107 // pred_check
          %p374 = pneg %p100
        $region118: #{decoder_block_forward.1} parent=107 // pred_check_branch
          %376 = sbr.rel (%p374) target = $region120
        $region119: #{decoder_block_forward.1} parent=107 // pred_region
          %378 = dma.done %s370, 256
        $region120: #{decoder_block_forward.1} parent=107 // pred_fallthru
          _
        %s379 = sand.u32 %s35, 1
        %s380 = sand.u32 %s35, 1
        %s381 = smul.addr %s380, 32
        %s382 = scalar_lea.vmem [#allocation2], %s381
        %p383 = pneg %p48
        %p384 = pneg %p45
        %s385 = sand.u32 %s61, 1
        %s386 = sand.u32 %s61, 1
        %s387 = smul.addr %s386, 32
        %s388 = scalar_lea.vmem [#allocation3], %s387
        %p389 = pneg %p74
        %p390 = pneg %p71
        %s391 = sand.u32 %s87, 1
        %s392 = scalar_lea.sflag [#allocation5], %s391
        %s393 = sand.u32 %s87, 1
        %s394 = smul.addr %s393, 16
        %s395 = scalar_lea.vmem [#allocation4], %s394
        %p396 = pneg %p100
        %p397 = pneg %p97
        %p398 = pneg %p121
        %p399 = pneg %p118
        %p400 = pneg %p142
        %p401 = pneg %p139
        %p402 = pneg %p168
        %p403 = pneg %p165
        %s404 = sand.u32 %s155, 1
        %s405 = scalar_lea.sflag [#allocation6], %s404
        %s406 = sand.u32 %s155, 1
        %s407 = smul.addr %s406, 32
        %s408 = scalar_lea.vmem [#allocation7], %s407
        %p409 = pneg %p194
        %p410 = pneg %p191
        %s411 = sand.u32 %s181, 1
        %s412 = scalar_lea.sflag [#allocation9], %s411
        %s413 = sand.u32 %s181, 1
        %s414 = smul.addr %s413, 16
        %s415 = scalar_lea.vmem [#allocation8], %s414
        %v417 = vld [vmem:[%s358] sm:$0xff]
        %v418 = vld [vmem:[%s358 + $0x8] sm:$0xff]
        %v419 = vld [vmem:[%s358 + $0x10] sm:$0xff]
        %v420 = vld [vmem:[%s358 + $0x18] sm:$0xff]
        %v421 = vld [vmem:[%s365] sm:$0xff]
        %v422 = vld [vmem:[%s365 + $0x8] sm:$0xff]
        %v423 = vld [vmem:[%s365 + $0x10] sm:$0xff]
        %v424 = vld [vmem:[%s365 + $0x18] sm:$0xff]
        %v425 = vld [vmem:[%s373] sm:$0xff]
        %v426 = vld [vmem:[%s373 + $0x8] sm:$0xff]
        %v427 = vpack.c.bf16 %v417, %v417
        %v428 = vpack.c.bf16 %v418, %v418
        %v429 = vpack.c.bf16 %v419, %v419
        %v430 = vpack.c.bf16 %v420, %v420
        %v431 = vunpack.c.l.bf16 %v427
        %v432 = vunpack.c.l.bf16 %v428
        %v433 = vunpack.c.l.bf16 %v429
        %v434 = vunpack.c.l.bf16 %v430
        %v435 = vmul.f32 %v431, %v431
        %v436 = vmul.f32 %v432, %v432
        %v437 = vmul.f32 %v433, %v433
        %v438 = vmul.f32 %v434, %v434
        %v439 = vpack.c.bf16 %v435, %v435
        %v440 = vpack.c.bf16 %v436, %v436
        %v441 = vpack.c.bf16 %v437, %v437
        %v442 = vpack.c.bf16 %v438, %v438
        %v443 = vunpack.c.l.bf16 %v439
        %v444 = vunpack.c.l.bf16 %v440
        %v445 = vunpack.c.l.bf16 %v441
        %v446 = vunpack.c.l.bf16 %v442
        %v447 = vmul.f32 %v431, %v443
        %v448 = vmul.f32 %v432, %v444
        %v449 = vmul.f32 %v433, %v445
        %v450 = vmul.f32 %v434, %v446
        %v451 = vpack.c.bf16 %v447, %v447
        %v452 = vpack.c.bf16 %v448, %v448
        %v453 = vpack.c.bf16 %v449, %v449
        %v454 = vpack.c.bf16 %v450, %v450
        %v455 = vunpack.c.l.bf16 %v451
        %v456 = vunpack.c.l.bf16 %v452
        %v457 = vunpack.c.l.bf16 %v453
        %v458 = vunpack.c.l.bf16 %v454
        %v459 = vmul.f32 %v455, 0.044677734
        %v460 = vmul.f32 %v456, 0.044677734
        %v461 = vmul.f32 %v457, 0.044677734
        %v462 = vmul.f32 %v458, 0.044677734
        %v463 = vpack.c.bf16 %v459, %v459
        %v464 = vpack.c.bf16 %v460, %v460
        %v465 = vpack.c.bf16 %v461, %v461
        %v466 = vpack.c.bf16 %v462, %v462
        %v467 = vunpack.c.l.bf16 %v463
        %v468 = vunpack.c.l.bf16 %v464
        %v469 = vunpack.c.l.bf16 %v465
        %v470 = vunpack.c.l.bf16 %v466
        %v471 = vadd.f32 %v431, %v467
        %v472 = vadd.f32 %v432, %v468
        %v473 = vadd.f32 %v433, %v469
        %v474 = vadd.f32 %v434, %v470
        %v475 = vpack.c.bf16 %v471, %v471
        %v476 = vpack.c.bf16 %v472, %v472
        %v477 = vpack.c.bf16 %v473, %v473
        %v478 = vpack.c.bf16 %v474, %v474
        %v479 = vunpack.c.l.bf16 %v475
        %v480 = vunpack.c.l.bf16 %v476
        %v481 = vunpack.c.l.bf16 %v477
        %v482 = vunpack.c.l.bf16 %v478
        %v483 = vmul.f32 %v479, 0.796875
        %v484 = vmul.f32 %v480, 0.796875
        %v485 = vmul.f32 %v481, 0.796875
        %v486 = vmul.f32 %v482, 0.796875
        %v487 = vpack.c.bf16 %v483, %v483
        %v488 = vpack.c.bf16 %v484, %v484
        %v489 = vpack.c.bf16 %v485, %v485
        %v490 = vpack.c.bf16 %v486, %v486
        %v491 = vunpack.c.l.bf16 %v487
        %v492 = vunpack.c.l.bf16 %v488
        %v493 = vunpack.c.l.bf16 %v489
        %v494 = vunpack.c.l.bf16 %v490
        %v495 = vtanh.pop %v491
        %v496 = vtanh.pop %v492
        %v497 = vtanh.pop %v493
        %v498 = vtanh.pop %v494
        %v499 = vpack.c.bf16 %v495, %v495
        %v500 = vpack.c.bf16 %v496, %v496
        %v501 = vpack.c.bf16 %v497, %v497
        %v502 = vpack.c.bf16 %v498, %v498
        %v503 = vunpack.c.l.bf16 %v499
        %v504 = vunpack.c.l.bf16 %v500
        %v505 = vunpack.c.l.bf16 %v501
        %v506 = vunpack.c.l.bf16 %v502
        %v507 = vadd.f32 %v503, 1.0
        %v508 = vadd.f32 %v504, 1.0
        %v509 = vadd.f32 %v505, 1.0
        %v510 = vadd.f32 %v506, 1.0
        %v511 = vpack.c.bf16 %v507, %v507
        %v512 = vpack.c.bf16 %v508, %v508
        %v513 = vpack.c.bf16 %v509, %v509
        %v514 = vpack.c.bf16 %v510, %v510
        %v515 = vunpack.c.l.bf16 %v511
        %v516 = vunpack.c.l.bf16 %v512
        %v517 = vunpack.c.l.bf16 %v513
        %v518 = vunpack.c.l.bf16 %v514
        %v519 = vmul.f32 %v515, 0.5
        %v520 = vmul.f32 %v516, 0.5
        %v521 = vmul.f32 %v517, 0.5
        %v522 = vmul.f32 %v518, 0.5
        %v523 = vpack.c.bf16 %v519, %v519
        %v524 = vpack.c.bf16 %v520, %v520
        %v525 = vpack.c.bf16 %v521, %v521
        %v526 = vpack.c.bf16 %v522, %v522
        %v527 = vunpack.c.l.bf16 %v523
        %v528 = vunpack.c.l.bf16 %v524
        %v529 = vunpack.c.l.bf16 %v525
        %v530 = vunpack.c.l.bf16 %v526
        %v531 = vmul.f32 %v431, %v527
        %v532 = vmul.f32 %v432, %v528
        %v533 = vmul.f32 %v433, %v529
        %v534 = vmul.f32 %v434, %v530
        %v535 = vpack.c.bf16 %v531, %v531
        %v536 = vpack.c.bf16 %v532, %v532
        %v537 = vpack.c.bf16 %v533, %v533
        %v538 = vpack.c.bf16 %v534, %v534
        %v539 = vpack.c.bf16 %v421, %v421
        %v540 = vpack.c.bf16 %v422, %v422
        %v541 = vpack.c.bf16 %v423, %v423
        %v542 = vpack.c.bf16 %v424, %v424
        %v543 = vunpack.c.l.bf16 %v539
        %v544 = vunpack.c.l.bf16 %v540
        %v545 = vunpack.c.l.bf16 %v541
        %v546 = vunpack.c.l.bf16 %v542
        %v547 = vmul.f32 %v543, %v543
        %v548 = vmul.f32 %v544, %v544
        %v549 = vmul.f32 %v545, %v545
        %v550 = vmul.f32 %v546, %v546
        %v551 = vpack.c.bf16 %v547, %v547
        %v552 = vpack.c.bf16 %v548, %v548
        %v553 = vpack.c.bf16 %v549, %v549
        %v554 = vpack.c.bf16 %v550, %v550
        %v555 = vunpack.c.l.bf16 %v551
        %v556 = vunpack.c.l.bf16 %v552
        %v557 = vunpack.c.l.bf16 %v553
        %v558 = vunpack.c.l.bf16 %v554
        %v559 = vmul.f32 %v543, %v555
        %v560 = vmul.f32 %v544, %v556
        %v561 = vmul.f32 %v545, %v557
        %v562 = vmul.f32 %v546, %v558
        %v563 = vpack.c.bf16 %v559, %v559
        %v564 = vpack.c.bf16 %v560, %v560
        %v565 = vpack.c.bf16 %v561, %v561
        %v566 = vpack.c.bf16 %v562, %v562
        %v567 = vunpack.c.l.bf16 %v563
        %v568 = vunpack.c.l.bf16 %v564
        %v569 = vunpack.c.l.bf16 %v565
        %v570 = vunpack.c.l.bf16 %v566
        %v571 = vmul.f32 %v567, 0.044677734
        %v572 = vmul.f32 %v568, 0.044677734
        %v573 = vmul.f32 %v569, 0.044677734
        %v574 = vmul.f32 %v570, 0.044677734
        %v575 = vpack.c.bf16 %v571, %v571
        %v576 = vpack.c.bf16 %v572, %v572
        %v577 = vpack.c.bf16 %v573, %v573
        %v578 = vpack.c.bf16 %v574, %v574
        %v579 = vunpack.c.l.bf16 %v575
        %v580 = vunpack.c.l.bf16 %v576
        %v581 = vunpack.c.l.bf16 %v577
        %v582 = vunpack.c.l.bf16 %v578
        %v583 = vadd.f32 %v543, %v579
        %v584 = vadd.f32 %v544, %v580
        %v585 = vadd.f32 %v545, %v581
        %v586 = vadd.f32 %v546, %v582
        %v587 = vpack.c.bf16 %v583, %v583
        %v588 = vpack.c.bf16 %v584, %v584
        %v589 = vpack.c.bf16 %v585, %v585
        %v590 = vpack.c.bf16 %v586, %v586
        %v591 = vunpack.c.l.bf16 %v587
        %v592 = vunpack.c.l.bf16 %v588
        %v593 = vunpack.c.l.bf16 %v589
        %v594 = vunpack.c.l.bf16 %v590
        %v595 = vmul.f32 %v591, 0.796875
        %v596 = vmul.f32 %v592, 0.796875
        %v597 = vmul.f32 %v593, 0.796875
        %v598 = vmul.f32 %v594, 0.796875
        %v599 = vpack.c.bf16 %v595, %v595
        %v600 = vpack.c.bf16 %v596, %v596
        %v601 = vpack.c.bf16 %v597, %v597
        %v602 = vpack.c.bf16 %v598, %v598
        %v603 = vunpack.c.l.bf16 %v599
        %v604 = vunpack.c.l.bf16 %v600
        %v605 = vunpack.c.l.bf16 %v601
        %v606 = vunpack.c.l.bf16 %v602
        %v607 = vtanh.pop %v603
        %v608 = vtanh.pop %v604
        %v609 = vtanh.pop %v605
        %v610 = vtanh.pop %v606
        %v611 = vpack.c.bf16 %v607, %v607
        %v612 = vpack.c.bf16 %v608, %v608
        %v613 = vpack.c.bf16 %v609, %v609
        %v614 = vpack.c.bf16 %v610, %v610
        %v615 = vunpack.c.l.bf16 %v611
        %v616 = vunpack.c.l.bf16 %v612
        %v617 = vunpack.c.l.bf16 %v613
        %v618 = vunpack.c.l.bf16 %v614
        %v619 = vadd.f32 %v615, 1.0
        %v620 = vadd.f32 %v616, 1.0
        %v621 = vadd.f32 %v617, 1.0
        %v622 = vadd.f32 %v618, 1.0
        %v623 = vpack.c.bf16 %v619, %v619
        %v624 = vpack.c.bf16 %v620, %v620
        %v625 = vpack.c.bf16 %v621, %v621
        %v626 = vpack.c.bf16 %v622, %v622
        %v627 = vunpack.c.l.bf16 %v623
        %v628 = vunpack.c.l.bf16 %v624
        %v629 = vunpack.c.l.bf16 %v625
        %v630 = vunpack.c.l.bf16 %v626
        %v631 = vmul.f32 %v627, 0.5
        %v632 = vmul.f32 %v628, 0.5
        %v633 = vmul.f32 %v629, 0.5
        %v634 = vmul.f32 %v630, 0.5
        %v635 = vpack.c.bf16 %v631, %v631
        %v636 = vpack.c.bf16 %v632, %v632
        %v637 = vpack.c.bf16 %v633, %v633
        %v638 = vpack.c.bf16 %v634, %v634
        %v639 = vunpack.c.l.bf16 %v635
        %v640 = vunpack.c.l.bf16 %v636
        %v641 = vunpack.c.l.bf16 %v637
        %v642 = vunpack.c.l.bf16 %v638
        %v643 = vmul.f32 %v543, %v639
        %v644 = vmul.f32 %v544, %v640
        %v645 = vmul.f32 %v545, %v641
        %v646 = vmul.f32 %v546, %v642
        %v647 = vpack.c.bf16 %v643, %v643
        %v648 = vpack.c.bf16 %v644, %v644
        %v649 = vpack.c.bf16 %v645, %v645
        %v650 = vpack.c.bf16 %v646, %v646
        %v655 = vunpack.c.l.b16 %v535
        %v656 = vunpack.c.l.b16 %v536
        %v657 = vunpack.c.l.b16 %v537
        %v658 = vunpack.c.l.b16 %v538
        %v659 = vpack.c.b16 %v656, %v655
        %v660 = vpack.c.b16 %v658, %v657
        %v667 = vunpack.c.l.b16 %v647
        %v668 = vunpack.c.l.b16 %v648
        %v669 = vunpack.c.l.b16 %v649
        %v670 = vunpack.c.l.b16 %v650
        %v671 = vpack.c.b16 %v668, %v667
        %v672 = vpack.c.b16 %v670, %v669
        %v675 = vld [vmem:[%s3] sm:$0xf]
        %v676 = vld [vmem:[%s3 + $0x8] sm:$0xf]
        %v677 = vld [vmem:[%s4 + $0x10] sm:$0xff]
        %v678 = vld [vmem:[%s4 + $0x18] sm:$0xff]
        %v681 = vunpack.c.l.b16 %v675
        %v682 = vunpack.c.l.b16 %v676
        %v683 = vpack.c.b16 %v682, %v681
        %vm684 = vcmask 523264
        %v686 = vsel %vm684, %v683, 0
        %688 = vmatpush.bf16.msra.mxu0 0
        %689 = vmatpush.bf16.msra.mxu0 0
        %690 = vmatpush.bf16.msra.mxu0 0
        %691 = vmatpush.bf16.msra.mxu0 0
        %692 = vmatpush.bf16.msra.mxu0 %v672
        %693 = vmatpush.bf16.msra.mxu0 %v671
        %694 = vmatpush.bf16.msra.mxu0 %v660
        %695 = vmatpush.bf16.msra.mxu0 %v659
        %696 = vmatmul.bf16.gmra.mxu0 %v686
        %v697 = vpop.f32.mrf.mxu0
        %v698 = vadd.f32 %v677, %v697
        %v699 = vpop.f32.mrf.mxu0
        %v700 = vadd.f32 %v678, %v699
        %701 = vdwg.mxu0
        %v702 = vmul.f32 %v698, %v698
        %v703 = vmul.f32 %v700, %v700
        %v704 = vmul.f32 %v698, %v702
        %v705 = vmul.f32 %v700, %v703
        %v706 = vmul.f32 %v704, 0.044715
        %v707 = vmul.f32 %v705, 0.044715
        %v708 = vadd.f32 %v698, %v706
        %v709 = vadd.f32 %v700, %v707
        %v710 = vmul.f32 %v708, 0.7978846
        %v711 = vmul.f32 %v709, 0.7978846
        %v712 = vtanh.pop %v710
        %v713 = vtanh.pop %v711
        %v714 = vadd.f32 %v712, 1.0
        %v715 = vadd.f32 %v713, 1.0
        %v716 = vmul.f32 %v714, 0.5
        %v717 = vmul.f32 %v715, 0.5
        %v718 = vmul.f32 %v698, %v716
        %v719 = vmul.f32 %v700, %v717
        %v720 = vld [vmem:[%s4] sm:$0x1]
        %721 = vrot.lane.b32.xlu0 %v718, 9
        %v722 = vpop.permute.xlu0 %721
        %723 = vrot.lane.b32.xlu0 %v719, 9
        %v724 = vpop.permute.xlu0 %723
        %v725 = vperm.slane %v720, 0
        %v726 = vmul.f32 %v722, %v725
        %v727 = vmul.f32 %v724, %v725
        %v728 = vpack.c.bf16 %v726, %v726
        %v729 = vpack.c.bf16 %v727, %v727
        %v730 = vld [vmem:[%s4 + $0x1] sm:$0x1]
        %731 = vrot.lane.b32.xlu0 %v718, 8
        %v732 = vpop.permute.xlu0 %731
        %733 = vrot.lane.b32.xlu0 %v719, 8
        %v734 = vpop.permute.xlu0 %733
        %v735 = vperm.slane %v730, 0
        %v736 = vmul.f32 %v732, %v735
        %v737 = vmul.f32 %v734, %v735
        %v738 = vpack.c.bf16 %v736, %v736
        %v739 = vpack.c.bf16 %v737, %v737
        %v740 = vld [vmem:[%s4 + $0x2] sm:$0x1]
        %741 = vrot.lane.b32.xlu0 %v718, 7
        %v742 = vpop.permute.xlu0 %741
        %743 = vrot.lane.b32.xlu0 %v719, 7
        %v744 = vpop.permute.xlu0 %743
        %v745 = vperm.slane %v740, 0
        %v746 = vmul.f32 %v742, %v745
        %v747 = vmul.f32 %v744, %v745
        %v748 = vpack.c.bf16 %v746, %v746
        %v749 = vpack.c.bf16 %v747, %v747
        %v750 = vld [vmem:[%s4 + $0x3] sm:$0x1]
        %751 = vrot.lane.b32.xlu0 %v718, 1
        %v752 = vpop.permute.xlu0 %751
        %753 = vrot.lane.b32.xlu0 %v719, 1
        %v754 = vpop.permute.xlu0 %753
        %v755 = vperm.slane %v750, 0
        %v756 = vmul.f32 %v752, %v755
        %v757 = vmul.f32 %v754, %v755
        %v758 = vpack.c.bf16 %v756, %v756
        %v759 = vpack.c.bf16 %v757, %v757
        %v760 = vpack.c.bf16 %v718, %v718
        %v761 = vpack.c.bf16 %v719, %v719
        %v762 = vld [vmem:[%s4 + $0x5] sm:$0x1]
        %763 = vrot.lane.b32.xlu0 %v718, 127
        %v764 = vpop.permute.xlu0 %763
        %765 = vrot.lane.b32.xlu0 %v719, 127
        %v766 = vpop.permute.xlu0 %765
        %v767 = vperm.slane %v762, 0
        %v768 = vmul.f32 %v764, %v767
        %v769 = vmul.f32 %v766, %v767
        %v770 = vpack.c.bf16 %v768, %v768
        %v771 = vpack.c.bf16 %v769, %v769
        %v772 = vld [vmem:[%s4 + $0x6] sm:$0x1]
        %773 = vrot.lane.b32.xlu0 %v718, 121
        %v774 = vpop.permute.xlu0 %773
        %775 = vrot.lane.b32.xlu0 %v719, 121
        %v776 = vpop.permute.xlu0 %775
        %v777 = vperm.slane %v772, 0
        %v778 = vmul.f32 %v774, %v777
        %v779 = vmul.f32 %v776, %v777
        %v780 = vpack.c.bf16 %v778, %v778
        %v781 = vpack.c.bf16 %v779, %v779
        %v782 = vld [vmem:[%s4 + $0x7] sm:$0x1]
        %783 = vrot.lane.b32.xlu0 %v718, 120
        %v784 = vpop.permute.xlu0 %783
        %785 = vrot.lane.b32.xlu0 %v719, 120
        %v786 = vpop.permute.xlu0 %785
        %v787 = vperm.slane %v782, 0
        %v788 = vmul.f32 %v784, %v787
        %v789 = vmul.f32 %v786, %v787
        %v790 = vpack.c.bf16 %v788, %v788
        %v791 = vpack.c.bf16 %v789, %v789
        %v792 = vld [vmem:[%s4 + $0x8] sm:$0x1]
        %793 = vrot.lane.b32.xlu0 %v718, 119
        %v794 = vpop.permute.xlu0 %793
        %795 = vrot.lane.b32.xlu0 %v719, 119
        %v796 = vpop.permute.xlu0 %795
        %v797 = vperm.slane %v792, 0
        %v798 = vmul.f32 %v794, %v797
        %v799 = vmul.f32 %v796, %v797
        %v800 = vpack.c.bf16 %v798, %v798
        %v801 = vpack.c.bf16 %v799, %v799
        %v804 = vunpack.c.l.b16 %v728
        %v805 = vunpack.c.l.b16 %v729
        %v806 = vpack.c.b16 %v805, %v804
        %v810 = vunpack.c.l.b16 %v738
        %v811 = vunpack.c.l.b16 %v739
        %v812 = vpack.c.b16 %v811, %v810
        %v816 = vunpack.c.l.b16 %v748
        %v817 = vunpack.c.l.b16 %v749
        %v818 = vpack.c.b16 %v817, %v816
        %v822 = vunpack.c.l.b16 %v758
        %v823 = vunpack.c.l.b16 %v759
        %v824 = vpack.c.b16 %v823, %v822
        %v828 = vunpack.c.l.b16 %v760
        %v829 = vunpack.c.l.b16 %v761
        %v830 = vpack.c.b16 %v829, %v828
        %v834 = vunpack.c.l.b16 %v770
        %v835 = vunpack.c.l.b16 %v771
        %v836 = vpack.c.b16 %v835, %v834
        %v840 = vunpack.c.l.b16 %v780
        %v841 = vunpack.c.l.b16 %v781
        %v842 = vpack.c.b16 %v841, %v840
        %v846 = vunpack.c.l.b16 %v790
        %v847 = vunpack.c.l.b16 %v791
        %v848 = vpack.c.b16 %v847, %v846
        %v852 = vunpack.c.l.b16 %v800
        %v853 = vunpack.c.l.b16 %v801
        %v854 = vpack.c.b16 %v853, %v852
        %v856 = vld [vmem:[%s3 + $0x10] sm:$0xff]
        %v857 = vld [vmem:[%s3 + $0x18] sm:$0xff]
        %v858 = vld [vmem:[%s4 + $0x20] sm:$0xff]
        %v859 = vld [vmem:[%s4 + $0x28] sm:$0xff]
        %v862 = vunpack.c.l.b16 %v856
        %v863 = vunpack.c.h.b16 %v856
        %v864 = vunpack.c.l.b16 %v857
        %v865 = vunpack.c.h.b16 %v857
        %v866 = vpack.c.b16 %v864, %v862
        %v867 = vpack.c.b16 %v865, %v863
        %vm869 = vcmask 130048
        %v871 = vsel %vm869, %v867, 0
        %873 = vmatpush.bf16.msra.mxu0 %v848
        %874 = vmatpush.bf16.msra.mxu0 %v842
        %875 = vmatpush.bf16.msra.mxu0 %v836
        %876 = vmatpush.bf16.msra.mxu0 %v830
        %877 = vmatpush.bf16.msra.mxu0 %v824
        %878 = vmatpush.bf16.msra.mxu0 %v818
        %879 = vmatpush.bf16.msra.mxu0 %v812
        %880 = vmatpush.bf16.msra.mxu0 %v806
        %881 = vmatmul.bf16.gmra.mxu0 %v866
        %v882 = vpop.f32.mrf.mxu0
        %v883 = vadd.f32 %v858, %v882
        %v884 = vpop.f32.mrf.mxu0
        %v885 = vadd.f32 %v859, %v884
        %886 = vdwg.mxu0
        %887 = vmatpush.bf16.msra.mxu0 0
        %888 = vmatpush.bf16.msra.mxu0 0
        %889 = vmatpush.bf16.msra.mxu0 0
        %890 = vmatpush.bf16.msra.mxu0 0
        %891 = vmatpush.bf16.msra.mxu0 0
        %892 = vmatpush.bf16.msra.mxu0 0
        %893 = vmatpush.bf16.msra.mxu0 0
        %894 = vmatpush.bf16.msra.mxu0 %v854
        %895 = vmatmul.bf16.gmra.mxu0 %v871
        %v896 = vpop.f32.mrf.mxu0
        %v897 = vadd.f32 %v883, %v896
        %v898 = vpop.f32.mrf.mxu0
        %v899 = vadd.f32 %v885, %v898
        %900 = vdwg.mxu0
        %v901 = vmul.f32 %v897, %v897
        %v902 = vmul.f32 %v899, %v899
        %v903 = vmul.f32 %v897, %v901
        %v904 = vmul.f32 %v899, %v902
        %v905 = vmul.f32 %v903, 0.044715
        %v906 = vmul.f32 %v904, 0.044715
        %v907 = vadd.f32 %v897, %v905
        %v908 = vadd.f32 %v899, %v906
        %v909 = vmul.f32 %v907, 0.7978846
        %v910 = vmul.f32 %v908, 0.7978846
        %v911 = vtanh.pop %v909
        %v912 = vtanh.pop %v910
        %v913 = vadd.f32 %v911, 1.0
        %v914 = vadd.f32 %v912, 1.0
        %v915 = vmul.f32 %v913, 0.5
        %v916 = vmul.f32 %v914, 0.5
        %v917 = vmul.f32 %v897, %v915
        %v918 = vmul.f32 %v899, %v916
        %919 = vrot.lane.b32.xlu0 %v917, 9
        %v920 = vpop.permute.xlu0 %919
        %921 = vrot.lane.b32.xlu0 %v918, 9
        %v922 = vpop.permute.xlu0 %921
        %v923 = vmul.f32 %v920, %v725
        %v924 = vmul.f32 %v922, %v725
        %v925 = vpack.c.bf16 %v923, %v923
        %v926 = vpack.c.bf16 %v924, %v924
        %927 = vrot.lane.b32.xlu0 %v917, 8
        %v928 = vpop.permute.xlu0 %927
        %929 = vrot.lane.b32.xlu0 %v918, 8
        %v930 = vpop.permute.xlu0 %929
        %v931 = vmul.f32 %v928, %v735
        %v932 = vmul.f32 %v930, %v735
        %v933 = vpack.c.bf16 %v931, %v931
        %v934 = vpack.c.bf16 %v932, %v932
        %935 = vrot.lane.b32.xlu0 %v917, 7
        %v936 = vpop.permute.xlu0 %935
        %937 = vrot.lane.b32.xlu0 %v918, 7
        %v938 = vpop.permute.xlu0 %937
        %v939 = vmul.f32 %v936, %v745
        %v940 = vmul.f32 %v938, %v745
        %v941 = vpack.c.bf16 %v939, %v939
        %v942 = vpack.c.bf16 %v940, %v940
        %943 = vrot.lane.b32.xlu0 %v917, 1
        %v944 = vpop.permute.xlu0 %943
        %945 = vrot.lane.b32.xlu0 %v918, 1
        %v946 = vpop.permute.xlu0 %945
        %v947 = vmul.f32 %v944, %v755
        %v948 = vmul.f32 %v946, %v755
        %v949 = vpack.c.bf16 %v947, %v947
        %v950 = vpack.c.bf16 %v948, %v948
        %v951 = vpack.c.bf16 %v917, %v917
        %v952 = vpack.c.bf16 %v918, %v918
        %953 = vrot.lane.b32.xlu0 %v917, 127
        %v954 = vpop.permute.xlu0 %953
        %955 = vrot.lane.b32.xlu0 %v918, 127
        %v956 = vpop.permute.xlu0 %955
        %v957 = vmul.f32 %v954, %v767
        %v958 = vmul.f32 %v956, %v767
        %v959 = vpack.c.bf16 %v957, %v957
        %v960 = vpack.c.bf16 %v958, %v958
        %961 = vrot.lane.b32.xlu0 %v917, 121
        %v962 = vpop.permute.xlu0 %961
        %963 = vrot.lane.b32.xlu0 %v918, 121
        %v964 = vpop.permute.xlu0 %963
        %v965 = vmul.f32 %v962, %v777
        %v966 = vmul.f32 %v964, %v777
        %v967 = vpack.c.bf16 %v965, %v965
        %v968 = vpack.c.bf16 %v966, %v966
        %969 = vrot.lane.b32.xlu0 %v917, 120
        %v970 = vpop.permute.xlu0 %969
        %971 = vrot.lane.b32.xlu0 %v918, 120
        %v972 = vpop.permute.xlu0 %971
        %v973 = vmul.f32 %v970, %v787
        %v974 = vmul.f32 %v972, %v787
        %v975 = vpack.c.bf16 %v973, %v973
        %v976 = vpack.c.bf16 %v974, %v974
        %977 = vrot.lane.b32.xlu0 %v917, 119
        %v978 = vpop.permute.xlu0 %977
        %979 = vrot.lane.b32.xlu0 %v918, 119
        %v980 = vpop.permute.xlu0 %979
        %v981 = vmul.f32 %v978, %v797
        %v982 = vmul.f32 %v980, %v797
        %v983 = vpack.c.bf16 %v981, %v981
        %v984 = vpack.c.bf16 %v982, %v982
        %v987 = vunpack.c.l.b16 %v925
        %v988 = vunpack.c.l.b16 %v926
        %v989 = vpack.c.b16 %v988, %v987
        %v993 = vunpack.c.l.b16 %v933
        %v994 = vunpack.c.l.b16 %v934
        %v995 = vpack.c.b16 %v994, %v993
        %v999 = vunpack.c.l.b16 %v941
        %v1000 = vunpack.c.l.b16 %v942
        %v1001 = vpack.c.b16 %v1000, %v999
        %v1005 = vunpack.c.l.b16 %v949
        %v1006 = vunpack.c.l.b16 %v950
        %v1007 = vpack.c.b16 %v1006, %v1005
        %v1011 = vunpack.c.l.b16 %v951
        %v1012 = vunpack.c.l.b16 %v952
        %v1013 = vpack.c.b16 %v1012, %v1011
        %v1017 = vunpack.c.l.b16 %v959
        %v1018 = vunpack.c.l.b16 %v960
        %v1019 = vpack.c.b16 %v1018, %v1017
        %v1023 = vunpack.c.l.b16 %v967
        %v1024 = vunpack.c.l.b16 %v968
        %v1025 = vpack.c.b16 %v1024, %v1023
        %v1029 = vunpack.c.l.b16 %v975
        %v1030 = vunpack.c.l.b16 %v976
        %v1031 = vpack.c.b16 %v1030, %v1029
        %v1035 = vunpack.c.l.b16 %v983
        %v1036 = vunpack.c.l.b16 %v984
        %v1037 = vpack.c.b16 %v1036, %v1035
        %v1039 = vld [vmem:[%s3 + $0x20] sm:$0xff]
        %v1040 = vld [vmem:[%s3 + $0x28] sm:$0xff]
        %v1041 = vld [vmem:[%s4 + $0x30] sm:$0xff]
        %v1042 = vld [vmem:[%s4 + $0x38] sm:$0xff]
        %v1045 = vunpack.c.l.b16 %v1039
        %v1046 = vunpack.c.h.b16 %v1039
        %v1047 = vunpack.c.l.b16 %v1040
        %v1048 = vunpack.c.h.b16 %v1040
        %v1049 = vpack.c.b16 %v1047, %v1045
        %v1050 = vpack.c.b16 %v1048, %v1046
        %v1053 = vsel %vm869, %v1050, 0
        %1055 = vmatpush.bf16.msra.mxu0 %v1031
        %1056 = vmatpush.bf16.msra.mxu0 %v1025
        %1057 = vmatpush.bf16.msra.mxu0 %v1019
        %1058 = vmatpush.bf16.msra.mxu0 %v1013
        %1059 = vmatpush.bf16.msra.mxu0 %v1007
        %1060 = vmatpush.bf16.msra.mxu0 %v1001
        %1061 = vmatpush.bf16.msra.mxu0 %v995
        %1062 = vmatpush.bf16.msra.mxu0 %v989
        %1063 = vmatmul.bf16.gmra.mxu0 %v1049
        %v1064 = vpop.f32.mrf.mxu0
        %v1065 = vadd.f32 %v1041, %v1064
        %v1066 = vpop.f32.mrf.mxu0
        %v1067 = vadd.f32 %v1042, %v1066
        %1068 = vdwg.mxu0
        %1069 = vmatpush.bf16.msra.mxu0 0
        %1070 = vmatpush.bf16.msra.mxu0 0
        %1071 = vmatpush.bf16.msra.mxu0 0
        %1072 = vmatpush.bf16.msra.mxu0 0
        %1073 = vmatpush.bf16.msra.mxu0 0
        %1074 = vmatpush.bf16.msra.mxu0 0
        %1075 = vmatpush.bf16.msra.mxu0 0
        %1076 = vmatpush.bf16.msra.mxu0 %v1037
        %1077 = vmatmul.bf16.gmra.mxu0 %v1053
        %v1078 = vpop.f32.mrf.mxu0
        %v1079 = vadd.f32 %v1065, %v1078
        %v1080 = vpop.f32.mrf.mxu0
        %v1081 = vadd.f32 %v1067, %v1080
        %1082 = vdwg.mxu0
        %v1083 = vpack.c.bf16 %v1079, %v1079
        %v1084 = vpack.c.bf16 %v1081, %v1081
        %v1085 = vunpack.c.l.bf16 %v1083
        %v1086 = vunpack.c.l.bf16 %v1084
        %v1087 = vmul.f32 %v1085, %v1085
        %v1088 = vmul.f32 %v1086, %v1086
        %v1089 = vpack.c.bf16 %v1087, %v1087
        %v1090 = vpack.c.bf16 %v1088, %v1088
        %v1091 = vunpack.c.l.bf16 %v1089
        %v1092 = vunpack.c.l.bf16 %v1090
        %v1093 = vmul.f32 %v1085, %v1091
        %v1094 = vmul.f32 %v1086, %v1092
        %v1095 = vpack.c.bf16 %v1093, %v1093
        %v1096 = vpack.c.bf16 %v1094, %v1094
        %v1097 = vunpack.c.l.bf16 %v1095
        %v1098 = vunpack.c.l.bf16 %v1096
        %v1099 = vmul.f32 %v1097, 0.044677734
        %v1100 = vmul.f32 %v1098, 0.044677734
        %v1101 = vpack.c.bf16 %v1099, %v1099
        %v1102 = vpack.c.bf16 %v1100, %v1100
        %v1103 = vunpack.c.l.bf16 %v1101
        %v1104 = vunpack.c.l.bf16 %v1102
        %v1105 = vadd.f32 %v1085, %v1103
        %v1106 = vadd.f32 %v1086, %v1104
        %v1107 = vpack.c.bf16 %v1105, %v1105
        %v1108 = vpack.c.bf16 %v1106, %v1106
        %v1109 = vunpack.c.l.bf16 %v1107
        %v1110 = vunpack.c.l.bf16 %v1108
        %v1111 = vmul.f32 %v1109, 0.796875
        %v1112 = vmul.f32 %v1110, 0.796875
        %v1113 = vpack.c.bf16 %v1111, %v1111
        %v1114 = vpack.c.bf16 %v1112, %v1112
        %v1115 = vunpack.c.l.bf16 %v1113
        %v1116 = vunpack.c.l.bf16 %v1114
        %v1117 = vtanh.pop %v1115
        %v1118 = vtanh.pop %v1116
        %v1119 = vpack.c.bf16 %v1117, %v1117
        %v1120 = vpack.c.bf16 %v1118, %v1118
        %v1121 = vunpack.c.l.bf16 %v1119
        %v1122 = vunpack.c.l.bf16 %v1120
        %v1123 = vadd.f32 %v1121, 1.0
        %v1124 = vadd.f32 %v1122, 1.0
        %v1125 = vpack.c.bf16 %v1123, %v1123
        %v1126 = vpack.c.bf16 %v1124, %v1124
        %v1127 = vunpack.c.l.bf16 %v1125
        %v1128 = vunpack.c.l.bf16 %v1126
        %v1129 = vmul.f32 %v1127, 0.5
        %v1130 = vmul.f32 %v1128, 0.5
        %v1131 = vpack.c.bf16 %v1129, %v1129
        %v1132 = vpack.c.bf16 %v1130, %v1130
        %v1133 = vunpack.c.l.bf16 %v1131
        %v1134 = vunpack.c.l.bf16 %v1132
        %v1135 = vmul.f32 %v1085, %v1133
        %v1136 = vmul.f32 %v1086, %v1134
        %v1137 = vpack.c.bf16 %v1136, %v1135
        %v1138 = vld [vmem:[%s3 + $0x30] sm:$0xf]
        %v1139 = vld [vmem:[%s3 + $0x38] sm:$0xf]
        %v1140 = vld [vmem:[%s3 + $0x40] sm:$0xf]
        %v1141 = vld [vmem:[%s3 + $0x48] sm:$0xf]
        %v1142 = vld [vmem:[%s3 + $0x50] sm:$0xf]
        %v1143 = vld [vmem:[%s3 + $0x58] sm:$0xf]
        %v1144 = vld [vmem:[%s3 + $0x60] sm:$0xf]
        %v1145 = vld [vmem:[%s3 + $0x68] sm:$0xf]
        %v1146 = vld [vmem:[%s3 + $0x70] sm:$0xf]
        %v1147 = vld [vmem:[%s3 + $0x78] sm:$0xf]
        %v1148 = vld [vmem:[%s3 + $0x80] sm:$0xf]
        %v1149 = vld [vmem:[%s3 + $0x88] sm:$0xf]
        %v1150 = vld [vmem:[%s4 + $0x40] sm:$0xff]
        %v1151 = vld [vmem:[%s4 + $0x48] sm:$0xff]
        %v1152 = vld [vmem:[%s4 + $0x50] sm:$0xff]
        %v1153 = vld [vmem:[%s4 + $0x58] sm:$0xff]
        %v1154 = vld [vmem:[%s4 + $0x60] sm:$0xff]
        %v1155 = vld [vmem:[%s4 + $0x68] sm:$0xff]
        %v1156 = vld [vmem:[%s4 + $0x70] sm:$0xff]
        %v1157 = vld [vmem:[%s4 + $0x78] sm:$0xff]
        %v1158 = vld [vmem:[%s4 + $0x80] sm:$0xff]
        %v1159 = vld [vmem:[%s4 + $0x88] sm:$0xff]
        %v1160 = vld [vmem:[%s4 + $0x90] sm:$0xff]
        %v1161 = vld [vmem:[%s4 + $0x98] sm:$0xff]
        %v1174 = vunpack.c.l.b16 %v1138
        %v1175 = vunpack.c.l.b16 %v1139
        %v1176 = vunpack.c.l.b16 %v1140
        %v1177 = vunpack.c.l.b16 %v1141
        %v1178 = vunpack.c.l.b16 %v1142
        %v1179 = vunpack.c.l.b16 %v1143
        %v1180 = vunpack.c.l.b16 %v1144
        %v1181 = vunpack.c.l.b16 %v1145
        %v1182 = vunpack.c.l.b16 %v1146
        %v1183 = vunpack.c.l.b16 %v1147
        %v1184 = vunpack.c.l.b16 %v1148
        %v1185 = vunpack.c.l.b16 %v1149
        %v1186 = vpack.c.b16 %v1175, %v1174
        %v1187 = vpack.c.b16 %v1177, %v1176
        %v1188 = vpack.c.b16 %v1179, %v1178
        %v1189 = vpack.c.b16 %v1181, %v1180
        %v1190 = vpack.c.b16 %v1183, %v1182
        %v1191 = vpack.c.b16 %v1185, %v1184
        %v1193 = vsel %vm869, %v1186, 0
        %v1196 = vsel %vm869, %v1187, 0
        %v1199 = vsel %vm869, %v1188, 0
        %v1202 = vsel %vm869, %v1189, 0
        %v1205 = vsel %vm869, %v1190, 0
        %v1208 = vsel %vm869, %v1191, 0
        %1210 = vmatpush.bf16.msra.mxu0 0
        %1211 = vmatpush.bf16.msra.mxu0 0
        %1212 = vmatpush.bf16.msra.mxu0 0
        %1213 = vmatpush.bf16.msra.mxu0 0
        %1214 = vmatpush.bf16.msra.mxu0 0
        %1215 = vmatpush.bf16.msra.mxu0 0
        %1216 = vmatpush.bf16.msra.mxu0 0
        %1217 = vmatpush.bf16.msra.mxu0 %v1137
        %1218 = vmatmul.bf16.gmra.mxu0 %v1193
        %v1219 = vpop.f32.mrf.mxu0
        %v1220 = vadd.f32 %v1150, %v1219
        %v1221 = vpop.f32.mrf.mxu0
        %v1222 = vadd.f32 %v1151, %v1221
        %1223 = vmatmul.bf16.gmra.mxu0 %v1196
        %v1224 = vpop.f32.mrf.mxu0
        %v1225 = vadd.f32 %v1152, %v1224
        %v1226 = vpop.f32.mrf.mxu0
        %v1227 = vadd.f32 %v1153, %v1226
        %1228 = vmatmul.bf16.gmra.mxu0 %v1199
        %v1229 = vpop.f32.mrf.mxu0
        %v1230 = vadd.f32 %v1154, %v1229
        %v1231 = vpop.f32.mrf.mxu0
        %v1232 = vadd.f32 %v1155, %v1231
        %1233 = vmatmul.bf16.gmra.mxu0 %v1202
        %v1234 = vpop.f32.mrf.mxu0
        %v1235 = vadd.f32 %v1156, %v1234
        %v1236 = vpop.f32.mrf.mxu0
        %v1237 = vadd.f32 %v1157, %v1236
        %1238 = vmatmul.bf16.gmra.mxu0 %v1205
        %v1239 = vpop.f32.mrf.mxu0
        %v1240 = vadd.f32 %v1158, %v1239
        %v1241 = vpop.f32.mrf.mxu0
        %v1242 = vadd.f32 %v1159, %v1241
        %1243 = vmatmul.bf16.gmra.mxu0 %v1208
        %v1244 = vpop.f32.mrf.mxu0
        %v1245 = vadd.f32 %v1160, %v1244
        %v1246 = vpop.f32.mrf.mxu0
        %v1247 = vadd.f32 %v1161, %v1246
        %1248 = vdwg.mxu0
        %v1249 = vmul.f32 %v1225, 1.442695
        %v1250 = vpow.pop %v1249
        %v1251 = vmul.f32 %v1227, 1.442695
        %v1252 = vpow.pop %v1251
        %v1253 = vmul.f32 %v1235, -2.0
        %v1254 = vmul.f32 %v1237, -2.0
        %v1255 = vmul.f32 %v1253, 1.442695
        %v1256 = vpow.pop %v1255
        %v1257 = vmul.f32 %v1254, 1.442695
        %v1258 = vpow.pop %v1257
        %v1259 = vsub.f32 %v1235, %v1225
        %v1260 = vsub.f32 %v1237, %v1227
        %v1261 = vmul.f32 %v1250, %v1250
        %v1262 = vmul.f32 %v1252, %v1252
        %v1263 = vsub.f32 %v1220, %v1230
        %v1264 = vsub.f32 %v1222, %v1232
        %v1265 = vmul.f32 %v1263, %v1263
        %v1266 = vmul.f32 %v1264, %v1264
        %v1267 = vadd.f32 %v1261, %v1265
        %v1268 = vadd.f32 %v1262, %v1266
        %v1269 = vmul.f32 %v1267, 0.5
        %v1270 = vmul.f32 %v1268, 0.5
        %v1271 = vmul.f32 %v1269, %v1256
        %v1272 = vmul.f32 %v1270, %v1258
        %v1273 = vadd.f32 %v1259, %v1271
        %v1274 = vadd.f32 %v1260, %v1272
        %v1275 = vsub.f32 %v1273, 0.5
        %v1276 = vsub.f32 %v1274, 0.5
        %v1277 = vmul.f32 %v1250, %v425
        %v1278 = vmul.f32 %v1252, %v426
        %v1279 = vadd.f32 %v1220, %v1277
        %v1280 = vadd.f32 %v1222, %v1278
        %v1281 = vadd.f32 %v417, %v1240
        %v1282 = vadd.f32 %v418, %v1242
        %v1283 = vadd.f32 %v419, %v1245
        %v1284 = vadd.f32 %v420, %v1247
        %v1285 = vpack.c.bf16 %v1280, %v1279
        %v1286 = vld [vmem:[%s3 + $0x90] sm:$0xf]
        %v1287 = vld [vmem:[%s3 + $0x98] sm:$0xf]
        %v1288 = vld [vmem:[%s3 + $0xa0] sm:$0xf]
        %v1289 = vld [vmem:[%s3 + $0xa8] sm:$0xf]
        %v1290 = vld [vmem:[%s4 + $0xa0] sm:$0xff]
        %v1291 = vld [vmem:[%s4 + $0xa8] sm:$0xff]
        %v1292 = vld [vmem:[%s4 + $0xb0] sm:$0xff]
        %v1293 = vld [vmem:[%s4 + $0xb8] sm:$0xff]
        %v1298 = vunpack.c.l.b16 %v1286
        %v1299 = vunpack.c.l.b16 %v1287
        %v1300 = vunpack.c.l.b16 %v1288
        %v1301 = vunpack.c.l.b16 %v1289
        %v1302 = vpack.c.b16 %v1299, %v1298
        %v1303 = vpack.c.b16 %v1301, %v1300
        %v1305 = vsel %vm869, %v1302, 0
        %v1308 = vsel %vm869, %v1303, 0
        %1310 = vmatpush.bf16.msra.mxu0 0
        %1311 = vmatpush.bf16.msra.mxu0 0
        %1312 = vmatpush.bf16.msra.mxu0 0
        %1313 = vmatpush.bf16.msra.mxu0 0
        %1314 = vmatpush.bf16.msra.mxu0 0
        %1315 = vmatpush.bf16.msra.mxu0 0
        %1316 = vmatpush.bf16.msra.mxu0 0
        %1317 = vmatpush.bf16.msra.mxu0 %v1285
        %1318 = vmatmul.bf16.gmra.mxu0 %v1305
        %v1319 = vpop.f32.mrf.mxu0
        %v1320 = vadd.f32 %v1290, %v1319
        %v1321 = vpop.f32.mrf.mxu0
        %v1322 = vadd.f32 %v1291, %v1321
        %1323 = vmatmul.bf16.gmra.mxu0 %v1308
        %v1324 = vpop.f32.mrf.mxu0
        %v1325 = vadd.f32 %v1292, %v1324
        %v1326 = vpop.f32.mrf.mxu0
        %v1327 = vadd.f32 %v1293, %v1326
        %1328 = vdwg.mxu0
        %v1329 = vadd.f32 %v1281, %v1320
        %v1330 = vadd.f32 %v1282, %v1322
        %v1331 = vadd.f32 %v1283, %v1325
        %v1332 = vadd.f32 %v1284, %v1327
        %v1333 = vpack.c.bf16 %v1329, %v1329
        %v1334 = vpack.c.bf16 %v1330, %v1330
        %v1335 = vpack.c.bf16 %v1331, %v1331
        %v1336 = vpack.c.bf16 %v1332, %v1332
        %v1337 = vunpack.c.l.bf16 %v1333
        %v1338 = vunpack.c.l.bf16 %v1334
        %v1339 = vunpack.c.l.bf16 %v1335
        %v1340 = vunpack.c.l.bf16 %v1336
        %v1341 = vmul.f32 %v1337, %v1337
        %v1342 = vmul.f32 %v1338, %v1338
        %v1343 = vmul.f32 %v1339, %v1339
        %v1344 = vmul.f32 %v1340, %v1340
        %v1345 = vpack.c.bf16 %v1341, %v1341
        %v1346 = vpack.c.bf16 %v1342, %v1342
        %v1347 = vpack.c.bf16 %v1343, %v1343
        %v1348 = vpack.c.bf16 %v1344, %v1344
        %v1349 = vunpack.c.l.bf16 %v1345
        %v1350 = vunpack.c.l.bf16 %v1346
        %v1351 = vunpack.c.l.bf16 %v1347
        %v1352 = vunpack.c.l.bf16 %v1348
        %v1353 = vmul.f32 %v1337, %v1349
        %v1354 = vmul.f32 %v1338, %v1350
        %v1355 = vmul.f32 %v1339, %v1351
        %v1356 = vmul.f32 %v1340, %v1352
        %v1357 = vpack.c.bf16 %v1353, %v1353
        %v1358 = vpack.c.bf16 %v1354, %v1354
        %v1359 = vpack.c.bf16 %v1355, %v1355
        %v1360 = vpack.c.bf16 %v1356, %v1356
        %v1361 = vunpack.c.l.bf16 %v1357
        %v1362 = vunpack.c.l.bf16 %v1358
        %v1363 = vunpack.c.l.bf16 %v1359
        %v1364 = vunpack.c.l.bf16 %v1360
        %v1365 = vmul.f32 %v1361, 0.044677734
        %v1366 = vmul.f32 %v1362, 0.044677734
        %v1367 = vmul.f32 %v1363, 0.044677734
        %v1368 = vmul.f32 %v1364, 0.044677734
        %v1369 = vpack.c.bf16 %v1365, %v1365
        %v1370 = vpack.c.bf16 %v1366, %v1366
        %v1371 = vpack.c.bf16 %v1367, %v1367
        %v1372 = vpack.c.bf16 %v1368, %v1368
        %v1373 = vunpack.c.l.bf16 %v1369
        %v1374 = vunpack.c.l.bf16 %v1370
        %v1375 = vunpack.c.l.bf16 %v1371
        %v1376 = vunpack.c.l.bf16 %v1372
        %v1377 = vadd.f32 %v1337, %v1373
        %v1378 = vadd.f32 %v1338, %v1374
        %v1379 = vadd.f32 %v1339, %v1375
        %v1380 = vadd.f32 %v1340, %v1376
        %v1381 = vpack.c.bf16 %v1377, %v1377
        %v1382 = vpack.c.bf16 %v1378, %v1378
        %v1383 = vpack.c.bf16 %v1379, %v1379
        %v1384 = vpack.c.bf16 %v1380, %v1380
        %v1385 = vunpack.c.l.bf16 %v1381
        %v1386 = vunpack.c.l.bf16 %v1382
        %v1387 = vunpack.c.l.bf16 %v1383
        %v1388 = vunpack.c.l.bf16 %v1384
        %v1389 = vmul.f32 %v1385, 0.796875
        %v1390 = vmul.f32 %v1386, 0.796875
        %v1391 = vmul.f32 %v1387, 0.796875
        %v1392 = vmul.f32 %v1388, 0.796875
        %v1393 = vpack.c.bf16 %v1389, %v1389
        %v1394 = vpack.c.bf16 %v1390, %v1390
        %v1395 = vpack.c.bf16 %v1391, %v1391
        %v1396 = vpack.c.bf16 %v1392, %v1392
        %v1397 = vunpack.c.l.bf16 %v1393
        %v1398 = vunpack.c.l.bf16 %v1394
        %v1399 = vunpack.c.l.bf16 %v1395
        %v1400 = vunpack.c.l.bf16 %v1396
        %v1401 = vtanh.pop %v1397
        %v1402 = vtanh.pop %v1398
        %v1403 = vtanh.pop %v1399
        %v1404 = vtanh.pop %v1400
        %v1405 = vpack.c.bf16 %v1401, %v1401
        %v1406 = vpack.c.bf16 %v1402, %v1402
        %v1407 = vpack.c.bf16 %v1403, %v1403
        %v1408 = vpack.c.bf16 %v1404, %v1404
        %v1409 = vunpack.c.l.bf16 %v1405
        %v1410 = vunpack.c.l.bf16 %v1406
        %v1411 = vunpack.c.l.bf16 %v1407
        %v1412 = vunpack.c.l.bf16 %v1408
        %v1413 = vadd.f32 %v1409, 1.0
        %v1414 = vadd.f32 %v1410, 1.0
        %v1415 = vadd.f32 %v1411, 1.0
        %v1416 = vadd.f32 %v1412, 1.0
        %v1417 = vpack.c.bf16 %v1413, %v1413
        %v1418 = vpack.c.bf16 %v1414, %v1414
        %v1419 = vpack.c.bf16 %v1415, %v1415
        %v1420 = vpack.c.bf16 %v1416, %v1416
        %v1421 = vunpack.c.l.bf16 %v1417
        %v1422 = vunpack.c.l.bf16 %v1418
        %v1423 = vunpack.c.l.bf16 %v1419
        %v1424 = vunpack.c.l.bf16 %v1420
        %v1425 = vmul.f32 %v1421, 0.5
        %v1426 = vmul.f32 %v1422, 0.5
        %v1427 = vmul.f32 %v1423, 0.5
        %v1428 = vmul.f32 %v1424, 0.5
        %v1429 = vpack.c.bf16 %v1425, %v1425
        %v1430 = vpack.c.bf16 %v1426, %v1426
        %v1431 = vpack.c.bf16 %v1427, %v1427
        %v1432 = vpack.c.bf16 %v1428, %v1428
        %v1433 = vunpack.c.l.bf16 %v1429
        %v1434 = vunpack.c.l.bf16 %v1430
        %v1435 = vunpack.c.l.bf16 %v1431
        %v1436 = vunpack.c.l.bf16 %v1432
        %v1437 = vmul.f32 %v1337, %v1433
        %v1438 = vmul.f32 %v1338, %v1434
        %v1439 = vmul.f32 %v1339, %v1435
        %v1440 = vmul.f32 %v1340, %v1436
        %v1441 = vpack.c.bf16 %v1438, %v1437
        %v1442 = vpack.c.bf16 %v1440, %v1439
        %v1443 = vld [vmem:[%s3 + $0xb0] sm:$0xf]
        %v1444 = vld [vmem:[%s4 + $0xc0] sm:$0xff]
        %vm1445 = vcmask 261120
        %v1447 = vsel %vm1445, %v1443, 0
        %1449 = vmatpush.bf16.msra.mxu0 0
        %1450 = vmatpush.bf16.msra.mxu0 0
        %1451 = vmatpush.bf16.msra.mxu0 0
        %1452 = vmatpush.bf16.msra.mxu0 0
        %1453 = vmatpush.bf16.msra.mxu0 0
        %1454 = vmatpush.bf16.msra.mxu0 0
        %1455 = vmatpush.bf16.msra.mxu0 %v1442
        %1456 = vmatpush.bf16.msra.mxu0 %v1441
        %1457 = vmatmul.bf16.gmra.mxu0 %v1447
        %v1458 = vpop.f32.mrf.mxu0
        %v1459 = vadd.f32 %v1444, %v1458
        %v1460 = vpop.f32.mrf.mxu0
        %1461 = vdwg.mxu0
        %v1462 = vmul.f32 %v1459, %v1459
        %v1463 = vmul.f32 %v1459, %v1462
        %v1464 = vmul.f32 %v1463, 0.044715
        %v1465 = vadd.f32 %v1459, %v1464
        %v1466 = vmul.f32 %v1465, 0.7978846
        %v1467 = vtanh.pop %v1466
        %v1468 = vadd.f32 %v1467, 1.0
        %v1469 = vmul.f32 %v1468, 0.5
        %v1470 = vmul.f32 %v1459, %v1469
        %1471 = vrot.lane.b32.xlu0 %v1470, 9
        %v1472 = vpop.permute.xlu0 %1471
        %v1473 = vmul.f32 %v1472, %v725
        %v1474 = vpack.c.bf16 %v1473, %v1473
        %1475 = vrot.lane.b32.xlu0 %v1470, 8
        %v1476 = vpop.permute.xlu0 %1475
        %v1477 = vmul.f32 %v1476, %v735
        %v1478 = vpack.c.bf16 %v1477, %v1477
        %1479 = vrot.lane.b32.xlu0 %v1470, 7
        %v1480 = vpop.permute.xlu0 %1479
        %v1481 = vmul.f32 %v1480, %v745
        %v1482 = vpack.c.bf16 %v1481, %v1481
        %1483 = vrot.lane.b32.xlu0 %v1470, 1
        %v1484 = vpop.permute.xlu0 %1483
        %v1485 = vmul.f32 %v1484, %v755
        %v1486 = vpack.c.bf16 %v1485, %v1485
        %v1487 = vpack.c.bf16 %v1470, %v1470
        %1488 = vrot.lane.b32.xlu0 %v1470, 127
        %v1489 = vpop.permute.xlu0 %1488
        %v1490 = vmul.f32 %v1489, %v767
        %v1491 = vpack.c.bf16 %v1490, %v1490
        %1492 = vrot.lane.b32.xlu0 %v1470, 121
        %v1493 = vpop.permute.xlu0 %1492
        %v1494 = vmul.f32 %v1493, %v777
        %v1495 = vpack.c.bf16 %v1494, %v1494
        %1496 = vrot.lane.b32.xlu0 %v1470, 120
        %v1497 = vpop.permute.xlu0 %1496
        %v1498 = vmul.f32 %v1497, %v787
        %v1499 = vpack.c.bf16 %v1498, %v1498
        %1500 = vrot.lane.b32.xlu0 %v1470, 119
        %v1501 = vpop.permute.xlu0 %1500
        %v1502 = vmul.f32 %v1501, %v797
        %v1503 = vpack.c.bf16 %v1502, %v1502
        %v1505 = vunpack.c.l.b16 %v1478
        %v1506 = vpack.c.b16 %v1505, %v1505
        %v1508 = vunpack.c.l.b16 %v1486
        %v1509 = vpack.c.b16 %v1508, %v1508
        %v1511 = vunpack.c.l.b16 %v1491
        %v1512 = vpack.c.b16 %v1511, %v1511
        %v1514 = vunpack.c.l.b16 %v1499
        %v1515 = vpack.c.b16 %v1514, %v1514
        %vm1516 = vcmask 1043456
        %v1519 = vsel %vm1516, %v1474, %v1506
        %v1523 = vsel %vm1516, %v1482, %v1509
        %v1527 = vsel %vm1516, %v1487, %v1512
        %v1531 = vsel %vm1516, %v1495, %v1515
        %v1533 = vld [vmem:[%s3 + $0xc0] sm:$0xf]
        %v1534 = vld [vmem:[%s4 + $0xc8] sm:$0xff]
        %vm1535 = vcmask 588800
        %v1537 = vsel %vm1535, %v1533, 0
        %v1540 = vsel %vm1516, %v1503, 0
        %1542 = vmatpush.bf16.msra.mxu0 0
        %1543 = vmatpush.bf16.msra.mxu0 0
        %1544 = vmatpush.bf16.msra.mxu0 0
        %1545 = vmatpush.bf16.msra.mxu0 %v1540
        %1546 = vmatpush.bf16.msra.mxu0 %v1531
        %1547 = vmatpush.bf16.msra.mxu0 %v1527
        %1548 = vmatpush.bf16.msra.mxu0 %v1523
        %1549 = vmatpush.bf16.msra.mxu0 %v1519
        %1550 = vmatmul.bf16.gmra.mxu0 %v1537
        %v1551 = vpop.f32.mrf.mxu0
        %v1552 = vadd.f32 %v1534, %v1551
        %v1553 = vpop.f32.mrf.mxu0
        %1554 = vdwg.mxu0
        %v1555 = vmul.f32 %v1552, %v1552
        %v1556 = vmul.f32 %v1552, %v1555
        %v1557 = vmul.f32 %v1556, 0.044715
        %v1558 = vadd.f32 %v1552, %v1557
        %v1559 = vmul.f32 %v1558, 0.7978846
        %v1560 = vtanh.pop %v1559
        %v1561 = vadd.f32 %v1560, 1.0
        %v1562 = vmul.f32 %v1561, 0.5
        %v1563 = vmul.f32 %v1552, %v1562
        %1564 = vrot.lane.b32.xlu0 %v1563, 9
        %v1565 = vpop.permute.xlu0 %1564
        %v1566 = vmul.f32 %v1565, %v725
        %v1567 = vpack.c.bf16 %v1566, %v1566
        %1568 = vrot.lane.b32.xlu0 %v1563, 8
        %v1569 = vpop.permute.xlu0 %1568
        %v1570 = vmul.f32 %v1569, %v735
        %v1571 = vpack.c.bf16 %v1570, %v1570
        %1572 = vrot.lane.b32.xlu0 %v1563, 7
        %v1573 = vpop.permute.xlu0 %1572
        %v1574 = vmul.f32 %v1573, %v745
        %v1575 = vpack.c.bf16 %v1574, %v1574
        %1576 = vrot.lane.b32.xlu0 %v1563, 1
        %v1577 = vpop.permute.xlu0 %1576
        %v1578 = vmul.f32 %v1577, %v755
        %v1579 = vpack.c.bf16 %v1578, %v1578
        %v1580 = vpack.c.bf16 %v1563, %v1563
        %1581 = vrot.lane.b32.xlu0 %v1563, 127
        %v1582 = vpop.permute.xlu0 %1581
        %v1583 = vmul.f32 %v1582, %v767
        %v1584 = vpack.c.bf16 %v1583, %v1583
        %1585 = vrot.lane.b32.xlu0 %v1563, 121
        %v1586 = vpop.permute.xlu0 %1585
        %v1587 = vmul.f32 %v1586, %v777
        %v1588 = vpack.c.bf16 %v1587, %v1587
        %1589 = vrot.lane.b32.xlu0 %v1563, 120
        %v1590 = vpop.permute.xlu0 %1589
        %v1591 = vmul.f32 %v1590, %v787
        %v1592 = vpack.c.bf16 %v1591, %v1591
        %1593 = vrot.lane.b32.xlu0 %v1563, 119
        %v1594 = vpop.permute.xlu0 %1593
        %v1595 = vmul.f32 %v1594, %v797
        %v1596 = vpack.c.bf16 %v1595, %v1595
        %v1598 = vunpack.c.l.b16 %v1571
        %v1599 = vpack.c.b16 %v1598, %v1598
        %v1601 = vunpack.c.l.b16 %v1579
        %v1602 = vpack.c.b16 %v1601, %v1601
        %v1604 = vunpack.c.l.b16 %v1584
        %v1605 = vpack.c.b16 %v1604, %v1604
        %v1607 = vunpack.c.l.b16 %v1592
        %v1608 = vpack.c.b16 %v1607, %v1607
        %v1611 = vsel %vm1516, %v1567, %v1599
        %v1615 = vsel %vm1516, %v1575, %v1602
        %v1619 = vsel %vm1516, %v1580, %v1605
        %v1623 = vsel %vm1516, %v1588, %v1608
        %v1625 = vld [vmem:[%s3 + $0xd0] sm:$0xf]
        %v1626 = vld [vmem:[%s4 + $0xd0] sm:$0xff]
        %v1628 = vsel %vm1535, %v1625, 0
        %v1631 = vsel %vm1516, %v1596, 0
        %1633 = vmatpush.bf16.msra.mxu0 0
        %1634 = vmatpush.bf16.msra.mxu0 0
        %1635 = vmatpush.bf16.msra.mxu0 0
        %1636 = vmatpush.bf16.msra.mxu0 %v1631
        %1637 = vmatpush.bf16.msra.mxu0 %v1623
        %1638 = vmatpush.bf16.msra.mxu0 %v1619
        %1639 = vmatpush.bf16.msra.mxu0 %v1615
        %1640 = vmatpush.bf16.msra.mxu0 %v1611
        %1641 = vmatmul.bf16.gmra.mxu0 %v1628
        %v1642 = vpop.f32.mrf.mxu0
        %v1643 = vadd.f32 %v1626, %v1642
        %v1644 = vpop.f32.mrf.mxu0
        %1645 = vdwg.mxu0
        %v1646 = vpack.c.bf16 %v1643, %v1643
        %v1647 = vunpack.c.l.bf16 %v1646
        %v1648 = vmul.f32 %v1647, %v1647
        %v1649 = vpack.c.bf16 %v1648, %v1648
        %v1650 = vunpack.c.l.bf16 %v1649
        %v1651 = vmul.f32 %v1647, %v1650
        %v1652 = vpack.c.bf16 %v1651, %v1651
        %v1653 = vunpack.c.l.bf16 %v1652
        %v1654 = vmul.f32 %v1653, 0.044677734
        %v1655 = vpack.c.bf16 %v1654, %v1654
        %v1656 = vunpack.c.l.bf16 %v1655
        %v1657 = vadd.f32 %v1647, %v1656
        %v1658 = vpack.c.bf16 %v1657, %v1657
        %v1659 = vunpack.c.l.bf16 %v1658
        %v1660 = vmul.f32 %v1659, 0.796875
        %v1661 = vpack.c.bf16 %v1660, %v1660
        %v1662 = vunpack.c.l.bf16 %v1661
        %v1663 = vtanh.pop %v1662
        %v1664 = vpack.c.bf16 %v1663, %v1663
        %v1665 = vunpack.c.l.bf16 %v1664
        %v1666 = vadd.f32 %v1665, 1.0
        %v1667 = vpack.c.bf16 %v1666, %v1666
        %v1668 = vunpack.c.l.bf16 %v1667
        %v1669 = vmul.f32 %v1668, 0.5
        %v1670 = vpack.c.bf16 %v1669, %v1669
        %v1671 = vunpack.c.l.bf16 %v1670
        %v1672 = vmul.f32 %v1647, %v1671
        %v1673 = vpack.c.bf16 %v1672, %v1672
        %v1674 = vld [vmem:[%s3 + $0xe0] sm:$0xf]
        %v1675 = vld [vmem:[%s3 + $0xe8] sm:$0xf]
        %v1676 = vld [vmem:[%s3 + $0xf0] sm:$0xf]
        %v1677 = vld [vmem:[%s3 + $0xf8] sm:$0xf]
        %v1678 = vld [vmem:[%s4 + $0xd8] sm:$0xff]
        %v1679 = vld [vmem:[%s4 + $0xe0] sm:$0xff]
        %v1680 = vld [vmem:[%s4 + $0xe8] sm:$0xff]
        %v1681 = vld [vmem:[%s4 + $0xf0] sm:$0xff]
        %v1686 = vunpack.c.l.b16 %v1674
        %v1687 = vunpack.c.l.b16 %v1675
        %v1688 = vunpack.c.l.b16 %v1676
        %v1689 = vunpack.c.l.b16 %v1677
        %v1690 = vpack.c.b16 %v1687, %v1686
        %v1691 = vpack.c.b16 %v1689, %v1688
        %vm1692 = vcmask 64512
        %v1694 = vsel %vm1692, %v1690, 0
        %v1697 = vsel %vm1692, %v1691, 0
        %v1700 = vsel %vm1516, %v1673, 0
        %1702 = vmatpush.bf16.msra.mxu0 0
        %1703 = vmatpush.bf16.msra.mxu0 0
        %1704 = vmatpush.bf16.msra.mxu0 0
        %1705 = vmatpush.bf16.msra.mxu0 0
        %1706 = vmatpush.bf16.msra.mxu0 0
        %1707 = vmatpush.bf16.msra.mxu0 0
        %1708 = vmatpush.bf16.msra.mxu0 0
        %1709 = vmatpush.bf16.msra.mxu0 %v1700
        %1710 = vmatmul.bf16.gmra.mxu0 %v1694
        %v1711 = vpop.f32.mrf.mxu0
        %v1712 = vadd.f32 %v1678, %v1711
        %v1713 = vpop.f32.mrf.mxu0
        %v1714 = vadd.f32 %v1679, %v1713
        %1715 = vmatmul.bf16.gmra.mxu0 %v1697
        %v1716 = vpop.f32.mrf.mxu0
        %v1717 = vadd.f32 %v1680, %v1716
        %v1718 = vpop.f32.mrf.mxu0
        %v1719 = vadd.f32 %v1681, %v1718
        %1720 = vdwg.mxu0
        %v1721 = vadd.f32 %v1712, %v1329
        %v1722 = vadd.f32 %v1714, %v1330
        %v1723 = vadd.f32 %v1717, %v1331
        %v1724 = vadd.f32 %v1719, %v1332
        %1725 = vst [vmem:[%s408] sm:$0xff] %v1721
        %1726 = vst [vmem:[%s408 + $0x8] sm:$0xff] %v1722
        %1727 = vst [vmem:[%s408 + $0x10] sm:$0xff] %v1723
        %1728 = vst [vmem:[%s408 + $0x18] sm:$0xff] %v1724
        %1729 = vst [vmem:[%s415] sm:$0xff] %v1275
        %1730 = vst [vmem:[%s415 + $0x8] sm:$0xff] %v1276
        %s1731 = sand.u32 %s155, 1
        %s1732 = scalar_lea.sflag [#allocation6], %s1731
        %s1733 = sand.u32 %s155, 1
        %s1734 = smul.addr %s1733, 32
        %s1735 = scalar_lea.vmem [#allocation7], %s1734
        %s1736 = sand.u32 %s181, 1
        %s1737 = scalar_lea.sflag [#allocation9], %s1736
        %s1738 = sand.u32 %s181, 1
        %s1739 = smul.addr %s1738, 16
        %s1740 = scalar_lea.vmem [#allocation8], %s1739
        // Predicated region
        $region121: #{decoder_block_forward.1} parent=107 // pred_check
          %p1741 = pneg %p165
        $region122: #{decoder_block_forward.1} parent=107 // pred_check_branch
          %1743 = sbr.rel (%p1741) target = $region124
        $region123: #{decoder_block_forward.1} parent=107 // pred_region
          %1745 = vsyncadd %s1732, 0
          %s1746 = smul.addr %s27, 8
          %s1747 = scalar_lea.hbm %s5, %s1746
          %s1748 = sshll.u32 %s1735, 4
          %s1749 = int_to_ptr.vmem [resolvable:$true] %s1748
          %s1750 = sshll.u32 %s1747, 4
          %s1751 = int_to_ptr.hbm [resolvable:$true] %s1750
          %1756 = dma.vmem_to_hbm [thread:$0]  %s1749, 512, %s1751, %s1732, 128, 256, 8
        $region124: #{decoder_block_forward.1} parent=107 // pred_fallthru
          _
        // Predicated region
        $region125: #{decoder_block_forward.1} parent=107 // pred_check
          %p1757 = pneg %p191
        $region126: #{decoder_block_forward.1} parent=107 // pred_check_branch
          %1759 = sbr.rel (%p1757) target = $region128
        $region127: #{decoder_block_forward.1} parent=107 // pred_region
          %1761 = vsyncadd %s1737, 0
          %s1762 = smul.addr %s27, 8
          %s1763 = scalar_lea.hbm %s6, %s1762
          %s1764 = sshll.u32 %s1740, 4
          %s1765 = int_to_ptr.vmem [resolvable:$true] %s1764
          %s1766 = sshll.u32 %s1763, 4
          %s1767 = int_to_ptr.hbm [resolvable:$true] %s1766
          %1772 = dma.vmem_to_hbm [thread:$0]  %s1765, 256, %s1767, %s1737, 128, 256, 8
        $region128: #{decoder_block_forward.1} parent=107 // pred_fallthru
          _
      $region108: #{decoder_block_forward.1} parent=5 // pred_fallthru
        _
      %p1773 = scmp.le.s32.totalorder 2, %s22
      // Predicated region
      $region129: #{decoder_block_forward.1} parent=5 // pred_check
        %p1774 = pneg %p1773
      $region130: #{decoder_block_forward.1} parent=5 // pred_check_branch
        %1776 = sbr.rel (%p1774) target = $region132
      $region131: #{decoder_block_forward.1} parent=5 // pred_region
        %s1777 = ssub.s32 %s22, 2
        // Predicated region
        $region133: #{decoder_block_forward.1} parent=131 // pred_check
          %p1778 = pneg %p171
        $region134: #{decoder_block_forward.1} parent=131 // pred_check_branch
          %1780 = sbr.rel (%p1778) target = $region136
        $region135: #{decoder_block_forward.1} parent=131 // pred_region
          %s1781 = sand.u32 %s156, 1
          %s1782 = scalar_lea.sflag [#allocation6], %s1781
          %s1783 = sand.u32 %s156, 1
          %s1784 = smul.addr %s1783, 32
          %s1785 = scalar_lea.vmem [#allocation7], %s1784
          %1787 = dma.done %s1782, 512
        $region136: #{decoder_block_forward.1} parent=131 // pred_fallthru
          _
        // Predicated region
        $region137: #{decoder_block_forward.1} parent=131 // pred_check
          %p1788 = pneg %p197
        $region138: #{decoder_block_forward.1} parent=131 // pred_check_branch
          %1790 = sbr.rel (%p1788) target = $region140
        $region139: #{decoder_block_forward.1} parent=131 // pred_region
          %s1791 = sand.u32 %s182, 1
          %s1792 = scalar_lea.sflag [#allocation9], %s1791
          %s1793 = sand.u32 %s182, 1
          %s1794 = smul.addr %s1793, 16
          %s1795 = scalar_lea.vmem [#allocation8], %s1794
          %1797 = dma.done %s1792, 256
        $region140: #{decoder_block_forward.1} parent=131 // pred_fallthru
          _
      $region132: #{decoder_block_forward.1} parent=5 // pred_fallthru
        _
    $region6: #{decoder_block_forward.1} parent=1 // loop_footer
      %s26 = sadd.s32 1, %s22
    $region7: #{decoder_block_forward.1} parent=1 // loop_footer_branch
      %21 = sbr.rel target = $region3
    $region8: #{decoder_block_forward.1} parent=1 // loop_exit
      _
    %1798 = vsyncpa [#allocation5], 1
    %s1799 = scalar_lea.sflag [#allocation5], 1
    %1800 = vsyncpa %s1799, 1
    %1801 = vsyncpa [#allocation6], 1
    %s1802 = scalar_lea.sflag [#allocation6], 1
    %1803 = vsyncpa %s1802, 1
    %1804 = vsyncpa [#allocation9], 1
    %s1805 = scalar_lea.sflag [#allocation9], 1
    %1806 = vsyncpa %s1805, 1

</llo_original>
